<compile_context>
chip_gen: v7x
topology: tpu7x:2x2x1
jax: 0.10.0
libtpu: 0.0.40
codegen_flags: <defaults>
</compile_context>

<pallas_src>
import functools

import jax
import jax.numpy as jnp
from jax import lax
from jax.experimental import pallas as pl
from jax.experimental.pallas import tpu as pltpu


def _round_up(x: int, m: int) -> int:
    return ((x + m - 1) // m) * m


def _pick_vmem_limit_bytes() -> int:
    """Scoped-VMEM limit: ~78% of physical, capped at 100 MiB."""
    try:
        cap = int(pltpu.get_tpu_info().vmem_capacity_bytes)
    except Exception:
        cap = 64 << 20  # conservative fallback (v7x per-TC size)
    return int(min(cap * 0.78, 100 << 20))


# ----------------------------- Pallas kernels -------------------------------

def _s_relu_resident_kernel(*refs, num_hidden: int, unroll: bool):
    """All layers fused; weights VMEM-resident; activations in bf16 scratch.

    refs (num_hidden > 0): x, wh(L,Ip,Ip), bh(L,1,Ip), wo(Ip,Op), bo(1,Op),
                           o(TM,Op), acc(TM,Ip)
    refs (num_hidden == 0): x, wo, bo, o, acc
    """
    if num_hidden:
        x_ref, wh_ref, bh_ref, wo_ref, bo_ref, o_ref, acc_ref = refs
    else:
        x_ref, wo_ref, bo_ref, o_ref, acc_ref = refs
        wh_ref = bh_ref = None

    cdt = acc_ref.dtype
    acc_ref[...] = x_ref[...].astype(cdt)

    def layer(l):
        a = acc_ref[...]
        y = jnp.dot(a, wh_ref[l], preferred_element_type=jnp.float32)
        y = y + bh_ref[l]                         # f32 bias, broadcasts (1, Ip)
        acc_ref[...] = jnp.maximum(y, 0.0).astype(cdt)

    if num_hidden:
        if unroll:                                # small L: full unroll
            for l in range(num_hidden):
                layer(l)
        else:                                     # large L: bounded code size
            def body(l, carry):
                layer(l)
                return carry
            lax.fori_loop(0, num_hidden, body, 0)

    y = jnp.dot(acc_ref[...], wo_ref[...], preferred_element_type=jnp.float32)
    y = y + bo_ref[...]
    o_ref[...] = y.astype(o_ref.dtype)


def _s_relu_streaming_kernel(x_ref, wh_ref, bh_ref, wo_ref, bo_ref, o_ref,
                             acc_ref):
    """One hidden layer per inner grid step; weights streamed (double-buffered
    by the pipeline); activation persists in scratch across layer steps."""
    l = pl.program_id(1)
    cdt = acc_ref.dtype

    @pl.when(l == 0)
    def _():
        acc_ref[...] = x_ref[...].astype(cdt)

    a = acc_ref[...]
    y = jnp.dot(a, wh_ref[0], preferred_element_type=jnp.float32)
    y = y + bh_ref[0]
    acc_ref[...] = jnp.maximum(y, 0.0).astype(cdt)

    @pl.when(l == pl.num_programs(1) - 1)
    def _():
        yo = jnp.dot(acc_ref[...], wo_ref[...],
                     preferred_element_type=jnp.float32)
        yo = yo + bo_ref[...]
        o_ref[...] = yo.astype(o_ref.dtype)


# ------------------------------ param prep -----------------------------------

def prepare_s_relu_params(hidden_w, hidden_b, out_w, out_b,
                          *, compute_dtype=jnp.bfloat16):
    """One-time pad + cast of static parameters (do NOT redo per forward call).

    hidden_w: [L, In, In], hidden_b: [L, In], out_w: [In, Out], out_b: [Out]
    """
    L = int(hidden_w.shape[0])
    In, Out = out_w.shape
    if L:
        assert hidden_w.shape == (L, In, In) and hidden_b.shape == (L, In)
    assert out_b.shape == (Out,)

    In_p = _round_up(In, 128)
    Out_p = _round_up(Out, 128)

    if L:
        whp = jnp.zeros((L, In_p, In_p), compute_dtype).at[:, :In, :In].set(
            hidden_w.astype(compute_dtype))
        bhp = jnp.zeros((L, 1, In_p), jnp.float32).at[:, 0, :In].set(
            hidden_b.astype(jnp.float32))
    else:
        whp = bhp = None
    wop = jnp.zeros((In_p, Out_p), compute_dtype).at[:In, :Out].set(
        out_w.astype(compute_dtype))
    bop = jnp.zeros((1, Out_p), jnp.float32).at[0, :Out].set(
        out_b.astype(jnp.float32))

    return dict(whp=whp, bhp=bhp, wop=wop, bop=bop, L=L, In=In, Out=Out,
                In_p=In_p, Out_p=Out_p, compute_dtype=compute_dtype)


# ------------------------------- wrapper ------------------------------------

def s_relu_forward(params, x, *, block_m=256, force_streaming=False):
    """Run the fused S_ReLU MLP.  x: [B, In] -> [B, Out]."""
    L = params["L"]
    In, Out = params["In"], params["Out"]
    In_p, Out_p = params["In_p"], params["Out_p"]
    cdt = params["compute_dtype"]
    whp, bhp, wop, bop = params["whp"], params["bhp"], params["wop"], params["bop"]

    B = x.shape[0]
    assert x.shape == (B, In)

    # Batch tile: multiple of 8, big enough to fill the 256x256 MXU, but keep
    # >= 2 grid tiles when possible so both v7x TensorCores get work.
    TM = max(8, min(_round_up(block_m, 8), _round_up(B, 8)))
    if _round_up(B, TM) // TM < 2 and B > 8:
        TM = max(8, _round_up(-(-B // 2), 8))
    B_p = _round_up(B, TM)

    # Only the input is padded per call (padded lanes stay 0 through ReLU).
    xp = jnp.zeros((B_p, In_p), x.dtype).at[:B, :In].set(x)

    vmem_limit = _pick_vmem_limit_bytes()
    itemsize = jnp.dtype(cdt).itemsize
    resident_w_bytes = L * In_p * In_p * itemsize
    use_streaming = L >= 1 and (force_streaming or
                                resident_w_bytes > vmem_limit // 2)

    cparams = lambda sem: pltpu.CompilerParams(
        dimension_semantics=sem, vmem_limit_bytes=vmem_limit)

    def const_spec(shape, imap, single):
        # Constant-block-index operands: single-buffer when supported.
        if single:
            return pl.BlockSpec(shape, imap, pipeline_mode=pl.Buffered(1))
        return pl.BlockSpec(shape, imap)

    if not use_streaming:
        def run(single_buffer):
            in_specs = [pl.BlockSpec((TM, In_p), lambda i: (i, 0))]
            args = [xp]
            if L:
                in_specs += [
                    const_spec((L, In_p, In_p), lambda i: (0, 0, 0), single_buffer),
                    const_spec((L, 1, In_p), lambda i: (0, 0, 0), single_buffer),
                ]
                args += [whp, bhp]
            in_specs += [
                const_spec((In_p, Out_p), lambda i: (0, 0), single_buffer),
                const_spec((1, Out_p), lambda i: (0, 0), single_buffer),
            ]
            args += [wop, bop]
            kernel = functools.partial(_s_relu_resident_kernel,
                                       num_hidden=L, unroll=(L <= 8))
            out = pl.pallas_call(
                kernel,
                out_shape=jax.ShapeDtypeStruct((B_p, Out_p), x.dtype),
                grid=(B_p // TM,),
                in_specs=in_specs,
                out_specs=pl.BlockSpec((TM, Out_p), lambda i: (i, 0)),
                scratch_shapes=[pltpu.VMEM((TM, In_p), cdt)],
                compiler_params=cparams(("parallel",)),
            )(*args)
            return jax.block_until_ready(out)
    else:
        def run(single_buffer):
            in_specs = [
                pl.BlockSpec((TM, In_p), lambda i, l: (i, 0)),
                pl.BlockSpec((1, In_p, In_p), lambda i, l: (l, 0, 0)),
                pl.BlockSpec((1, 1, In_p), lambda i, l: (l, 0, 0)),
                const_spec((In_p, Out_p), lambda i, l: (0, 0), single_buffer),
                const_spec((1, Out_p), lambda i, l: (0, 0), single_buffer),
            ]
            out = pl.pallas_call(
                _s_relu_streaming_kernel,
                out_shape=jax.ShapeDtypeStruct((B_p, Out_p), x.dtype),
                grid=(B_p // TM, L),
                in_specs=in_specs,
                out_specs=pl.BlockSpec((TM, Out_p), lambda i, l: (i, 0)),
                scratch_shapes=[pltpu.VMEM((TM, In_p), cdt)],
                compiler_params=cparams(("parallel", "arbitrary")),
            )(xp, whp, bhp, wop, bop)
            return jax.block_until_ready(out)

    try:
        out = run(True)            # single-buffered constant-index operands
    except Exception:
        out = run(False)           # fall back to default double buffering

    return out[:B, :Out]


# ------------------------------ param init ----------------------------------

def init_s_relu_params(key, inp_size, outp_size, hidden_layers,
                       dtype=jnp.float32):
    """Deterministic init mirroring torch.nn.Linear U(-k, k), k=1/sqrt(fan_in)."""
    bound = 1.0 / (inp_size ** 0.5)
    hw, hb = [], []
    for _ in range(hidden_layers):
        key, kw, kb = jax.random.split(key, 3)
        hw.append(jax.random.uniform(kw, (inp_size, inp_size), dtype,
                                     minval=-bound, maxval=bound))
        hb.append(jax.random.uniform(kb, (inp_size,), dtype,
                                     minval=-bound, maxval=bound))
    key, kw, kb = jax.random.split(key, 3)
    out_w = jax.random.uniform(kw, (inp_size, outp_size), dtype,
                               minval=-bound, maxval=bound)
    out_b = jax.random.uniform(kb, (outp_size,), dtype,
                               minval=-bound, maxval=bound)
    if hidden_layers:
        hidden_w = jnp.stack(hw)
        hidden_b = jnp.stack(hb)
    else:
        hidden_w = jnp.zeros((0, inp_size, inp_size), dtype)
        hidden_b = jnp.zeros((0, inp_size), dtype)
    return hidden_w, hidden_b, out_w, out_b


# ------------------------------ reference -----------------------------------

def s_relu_ref(hidden_w, hidden_b, out_w, out_b, x,
               compute_dtype=jnp.bfloat16):
    """Pure-JAX reference using the same bf16 matmul-input rounding."""
    def mm(a, w):
        return jnp.dot(a.astype(compute_dtype).astype(jnp.float32),
                       w.astype(compute_dtype).astype(jnp.float32))
    act = x.astype(jnp.float32)
    for l in range(hidden_w.shape[0]):
        act = jnp.maximum(mm(act, hidden_w[l]) + hidden_b[l], 0.0)
    return mm(act, out_w) + out_b


if __name__ == "__main__":
    batch = 64
    inp_size = 32
    outp_size = 16

    key = jax.random.PRNGKey(0)
    key, kx, k1, k2, k3 = jax.random.split(key, 5)
    x = jax.random.normal(kx, (batch, inp_size), jnp.float32)

    def check(out, ref):
        assert out.shape == ref.shape, (out.shape, ref.shape)
        err = float(jnp.max(jnp.abs(out - ref)))
        assert jnp.allclose(out, ref, atol=1e-2, rtol=1e-2), err

    # 1) hidden_layers=2: resident (unrolled) path, >=2 batch tiles.
    hw, hb, ow, ob = init_s_relu_params(k1, inp_size, outp_size, 2)
    prep = prepare_s_relu_params(hw, hb, ow, ob)
    ref = s_relu_ref(hw, hb, ow, ob, x)
    out = s_relu_forward(prep, x)
    check(out, ref)

    # 2) Same params, forced layer-streaming path (v7x large-model fallback).
    out_s = s_relu_forward(prep, x, force_streaming=True)
    check(out_s, ref)

    # 3) hidden_layers=10: resident path with lax.fori_loop over layers.
    hw10, hb10, ow10, ob10 = init_s_relu_params(k2, inp_size, outp_size, 10)
    prep10 = prepare_s_relu_params(hw10, hb10, ow10, ob10)
    out10 = s_relu_forward(prep10, x)
    check(out10, s_relu_ref(hw10, hb10, ow10, ob10, x))

    # 4) hidden_layers=0: just the output Linear (no dummy hidden block).
    hw0, hb0, ow0, ob0 = init_s_relu_params(k3, inp_size, outp_size, 0)
    prep0 = prepare_s_relu_params(hw0, hb0, ow0, ob0)
    out0 = s_relu_forward(prep0, x)
    check(out0, s_relu_ref(hw0, hb0, ow0, ob0, x))

    print("KERNEL_OK")
</pallas_src>

<mosaic_0001>
module attributes {stable_mosaic.version = 11 : i64} {
  func.func @_s_relu_resident_kernel(%arg0: i32, %arg1: memref<32x128xf32, #tpu.memory_space<vmem>>, %arg2: memref<2x128x128xbf16, #tpu.memory_space<vmem>>, %arg3: memref<2x1x128xf32, #tpu.memory_space<vmem>>, %arg4: memref<128x128xbf16, #tpu.memory_space<vmem>>, %arg5: memref<1x128xf32, #tpu.memory_space<vmem>>, %arg6: memref<32x128xf32, #tpu.memory_space<vmem>>, %arg7: memref<32x128xbf16, #tpu.memory_space<vmem>>) attributes {dimension_semantics = [#tpu.dimension_semantics<parallel>], iteration_bounds = array<i64: 2>, scalar_prefetch = 0 : i64, scratch_operands = 1 : i64, tpu.core_type = #tpu.core_type<tc>, window_params = [{transform_indices = @transform_0, window_bounds = array<i64: 32, 128>}, {pipeline_mode = #tpu.pipeline_mode<synchronous>, transform_indices = @transform_1, window_bounds = array<i64: 2, 128, 128>}, {pipeline_mode = #tpu.pipeline_mode<synchronous>, transform_indices = @transform_2, window_bounds = array<i64: 2, 1, 128>}, {pipeline_mode = #tpu.pipeline_mode<synchronous>, transform_indices = @transform_3, window_bounds = array<i64: 128, 128>}, {pipeline_mode = #tpu.pipeline_mode<synchronous>, transform_indices = @transform_4, window_bounds = array<i64: 1, 128>}, {transform_indices = @transform_5, window_bounds = array<i64: 32, 128>}]} {
    %c0 = arith.constant 0 : index
    %c0_0 = arith.constant 0 : index
    %0 = vector.load %arg1[%c0, %c0_0] : memref<32x128xf32, #tpu.memory_space<vmem>>, vector<32x128xf32>
    %1 = arith.truncf %0 : vector<32x128xf32> to vector<32x128xbf16>
    %c0_1 = arith.constant 0 : index
    %c0_2 = arith.constant 0 : index
    %2 = vector.load %arg7[%c0_1, %c0_2] : memref<32x128xbf16, #tpu.memory_space<vmem>>, vector<32x128xbf16>
    tpu.vector_store %arg7[%c0_1, %c0_2], %1 {strides = array<i32>} : memref<32x128xbf16, #tpu.memory_space<vmem>>, vector<32x128xbf16>,
    %c0_3 = arith.constant 0 : index
    %c0_4 = arith.constant 0 : index
    %3 = vector.load %arg7[%c0_3, %c0_4] : memref<32x128xbf16, #tpu.memory_space<vmem>>, vector<32x128xbf16>
    %c0_5 = arith.constant 0 : index
    %c0_6 = arith.constant 0 : index
    %c0_7 = arith.constant 0 : index
    %4 = vector.load %arg2[%c0_5, %c0_6, %c0_7] : memref<2x128x128xbf16, #tpu.memory_space<vmem>>, vector<1x128x128xbf16>
    %5 = vector.shape_cast %4 : vector<1x128x128xbf16> to vector<128x128xbf16>
    %cst = arith.constant dense<0.000000e+00> : vector<32x128xf32>
    %6 = tpu.matmul %3, %5, %cst {dimension_numbers = #tpu.dot_dimension_numbers<[1], [0], [0], [1], [0, 0, 1, 1], [], []>} : vector<32x128xbf16>, vector<128x128xbf16>, vector<32x128xf32> -> vector<32x128xf32>
    %c0_8 = arith.constant 0 : index
    %c0_9 = arith.constant 0 : index
    %c0_10 = arith.constant 0 : index
    %7 = vector.load %arg3[%c0_8, %c0_9, %c0_10] : memref<2x1x128xf32, #tpu.memory_space<vmem>>, vector<1x1x128xf32>
    %8 = vector.shape_cast %7 : vector<1x1x128xf32> to vector<1x128xf32>
    %9 = vector.broadcast %8 : vector<1x128xf32> to vector<32x128xf32>
    %10 = arith.addf %6, %9 : vector<32x128xf32>
    %cst_11 = arith.constant 0.000000e+00 : f32
    %11 = vector.broadcast %cst_11 : f32 to vector<32x128xf32>
    %12 = arith.maximumf %10, %11 : vector<32x128xf32>
    %13 = arith.truncf %12 : vector<32x128xf32> to vector<32x128xbf16>
    %c0_12 = arith.constant 0 : index
    %c0_13 = arith.constant 0 : index
    %14 = vector.load %arg7[%c0_12, %c0_13] : memref<32x128xbf16, #tpu.memory_space<vmem>>, vector<32x128xbf16>
    tpu.vector_store %arg7[%c0_12, %c0_13], %13 {strides = array<i32>} : memref<32x128xbf16, #tpu.memory_space<vmem>>, vector<32x128xbf16>,
    %c0_14 = arith.constant 0 : index
    %c0_15 = arith.constant 0 : index
    %15 = vector.load %arg7[%c0_14, %c0_15] : memref<32x128xbf16, #tpu.memory_space<vmem>>, vector<32x128xbf16>
    %c1 = arith.constant 1 : index
    %c0_16 = arith.constant 0 : index
    %c0_17 = arith.constant 0 : index
    %16 = vector.load %arg2[%c1, %c0_16, %c0_17] : memref<2x128x128xbf16, #tpu.memory_space<vmem>>, vector<1x128x128xbf16>
    %17 = vector.shape_cast %16 : vector<1x128x128xbf16> to vector<128x128xbf16>
    %cst_18 = arith.constant dense<0.000000e+00> : vector<32x128xf32>
    %18 = tpu.matmul %15, %17, %cst_18 {dimension_numbers = #tpu.dot_dimension_numbers<[1], [0], [0], [1], [0, 0, 1, 1], [], []>} : vector<32x128xbf16>, vector<128x128xbf16>, vector<32x128xf32> -> vector<32x128xf32>
    %c1_19 = arith.constant 1 : index
    %c0_20 = arith.constant 0 : index
    %c0_21 = arith.constant 0 : index
    %19 = vector.load %arg3[%c1_19, %c0_20, %c0_21] : memref<2x1x128xf32, #tpu.memory_space<vmem>>, vector<1x1x128xf32>
    %20 = vector.shape_cast %19 : vector<1x1x128xf32> to vector<1x128xf32>
    %21 = vector.broadcast %20 : vector<1x128xf32> to vector<32x128xf32>
    %22 = arith.addf %18, %21 : vector<32x128xf32>
    %cst_22 = arith.constant 0.000000e+00 : f32
    %23 = vector.broadcast %cst_22 : f32 to vector<32x128xf32>
    %24 = arith.maximumf %22, %23 : vector<32x128xf32>
    %25 = arith.truncf %24 : vector<32x128xf32> to vector<32x128xbf16>
    %c0_23 = arith.constant 0 : index
    %c0_24 = arith.constant 0 : index
    %26 = vector.load %arg7[%c0_23, %c0_24] : memref<32x128xbf16, #tpu.memory_space<vmem>>, vector<32x128xbf16>
    tpu.vector_store %arg7[%c0_23, %c0_24], %25 {strides = array<i32>} : memref<32x128xbf16, #tpu.memory_space<vmem>>, vector<32x128xbf16>,
    %c0_25 = arith.constant 0 : index
    %c0_26 = arith.constant 0 : index
    %27 = vector.load %arg7[%c0_25, %c0_26] : memref<32x128xbf16, #tpu.memory_space<vmem>>, vector<32x128xbf16>
    %c0_27 = arith.constant 0 : index
    %c0_28 = arith.constant 0 : index
    %28 = vector.load %arg4[%c0_27, %c0_28] : memref<128x128xbf16, #tpu.memory_space<vmem>>, vector<128x128xbf16>
    %cst_29 = arith.constant dense<0.000000e+00> : vector<32x128xf32>
    %29 = tpu.matmul %27, %28, %cst_29 {dimension_numbers = #tpu.dot_dimension_numbers<[1], [0], [0], [1], [0, 0, 1, 1], [], []>} : vector<32x128xbf16>, vector<128x128xbf16>, vector<32x128xf32> -> vector<32x128xf32>
    %c0_30 = arith.constant 0 : index
    %c0_31 = arith.constant 0 : index
    %30 = vector.load %arg5[%c0_30, %c0_31] : memref<1x128xf32, #tpu.memory_space<vmem>>, vector<1x128xf32>
    %31 = vector.broadcast %30 : vector<1x128xf32> to vector<32x128xf32>
    %32 = arith.addf %29, %31 : vector<32x128xf32>
    %c0_32 = arith.constant 0 : index
    %c0_33 = arith.constant 0 : index
    %33 = vector.load %arg6[%c0_32, %c0_33] : memref<32x128xf32, #tpu.memory_space<vmem>>, vector<32x128xf32>
    tpu.vector_store %arg6[%c0_32, %c0_33], %32 {strides = array<i32>} : memref<32x128xf32, #tpu.memory_space<vmem>>, vector<32x128xf32>,
    return
  }
  func.func @transform_0(%arg0: i32) -> (i32, i32) {
    %c0_i32 = arith.constant 0 : i32
    %c0_i32_0 = arith.constant 0 : i32
    return %arg0, %c0_i32 : i32, i32
  }
  func.func @transform_1(%arg0: i32) -> (i32, i32, i32) {
    %c0_i32 = arith.constant 0 : i32
    %c0_i32_0 = arith.constant 0 : i32
    %c0_i32_1 = arith.constant 0 : i32
    %c0_i32_2 = arith.constant 0 : i32
    return %c0_i32, %c0_i32_0, %c0_i32_1 : i32, i32, i32
  }
  func.func @transform_2(%arg0: i32) -> (i32, i32, i32) {
    %c0_i32 = arith.constant 0 : i32
    %c0_i32_0 = arith.constant 0 : i32
    %c0_i32_1 = arith.constant 0 : i32
    %c0_i32_2 = arith.constant 0 : i32
    return %c0_i32, %c0_i32_0, %c0_i32_1 : i32, i32, i32
  }
  func.func @transform_3(%arg0: i32) -> (i32, i32) {
    %c0_i32 = arith.constant 0 : i32
    %c0_i32_0 = arith.constant 0 : i32
    %c0_i32_1 = arith.constant 0 : i32
    return %c0_i32, %c0_i32_0 : i32, i32
  }
  func.func @transform_4(%arg0: i32) -> (i32, i32) {
    %c0_i32 = arith.constant 0 : i32
    %c0_i32_0 = arith.constant 0 : i32
    %c0_i32_1 = arith.constant 0 : i32
    return %c0_i32, %c0_i32_0 : i32, i32
  }
  func.func @transform_5(%arg0: i32) -> (i32, i32) {
    %c0_i32 = arith.constant 0 : i32
    %c0_i32_0 = arith.constant 0 : i32
    return %arg0, %c0_i32 : i32, i32
  }
}

module attributes {stable_mosaic.version = 11 : i64} {
  func.func @_s_relu_resident_kernel(%arg0: i32, %arg1: memref<32x128xf32, #tpu.memory_space<vmem>>, %arg2: memref<2x128x128xbf16, #tpu.memory_space<vmem>>, %arg3: memref<2x1x128xf32, #tpu.memory_space<vmem>>, %arg4: memref<128x128xbf16, #tpu.memory_space<vmem>>, %arg5: memref<1x128xf32, #tpu.memory_space<vmem>>, %arg6: memref<32x128xf32, #tpu.memory_space<vmem>>, %arg7: memref<32x128xbf16, #tpu.memory_space<vmem>>) attributes {dimension_semantics = [#tpu.dimension_semantics<parallel>], iteration_bounds = array<i64: 2>, scalar_prefetch = 0 : i64, scratch_operands = 1 : i64, tpu.core_type = #tpu.core_type<tc>, window_params = [{transform_indices = @transform_0, window_bounds = array<i64: 32, 128>}, {pipeline_mode = #tpu.pipeline_mode<synchronous>, transform_indices = @transform_1, window_bounds = array<i64: 2, 128, 128>}, {pipeline_mode = #tpu.pipeline_mode<synchronous>, transform_indices = @transform_2, window_bounds = array<i64: 2, 1, 128>}, {pipeline_mode = #tpu.pipeline_mode<synchronous>, transform_indices = @transform_3, window_bounds = array<i64: 128, 128>}, {pipeline_mode = #tpu.pipeline_mode<synchronous>, transform_indices = @transform_4, window_bounds = array<i64: 1, 128>}, {transform_indices = @transform_5, window_bounds = array<i64: 32, 128>}]} {
    %c0 = arith.constant 0 : index
    %c0_0 = arith.constant 0 : index
    %0 = vector.load %arg1[%c0, %c0_0] : memref<32x128xf32, #tpu.memory_space<vmem>>, vector<32x128xf32>
    %1 = arith.truncf %0 : vector<32x128xf32> to vector<32x128xbf16>
    %c0_1 = arith.constant 0 : index
    %c0_2 = arith.constant 0 : index
    %2 = vector.load %arg7[%c0_1, %c0_2] : memref<32x128xbf16, #tpu.memory_space<vmem>>, vector<32x128xbf16>
    tpu.vector_store %arg7[%c0_1, %c0_2], %1 {strides = array<i32>} : memref<32x128xbf16, #tpu.memory_space<vmem>>, vector<32x128xbf16>,
    %c0_3 = arith.constant 0 : index
    %c0_4 = arith.constant 0 : index
    %3 = vector.load %arg7[%c0_3, %c0_4] : memref<32x128xbf16, #tpu.memory_space<vmem>>, vector<32x128xbf16>
    %c0_5 = arith.constant 0 : index
    %c0_6 = arith.constant 0 : index
    %c0_7 = arith.constant 0 : index
    %4 = vector.load %arg2[%c0_5, %c0_6, %c0_7] : memref<2x128x128xbf16, #tpu.memory_space<vmem>>, vector<1x128x128xbf16>
    %5 = vector.shape_cast %4 : vector<1x128x128xbf16> to vector<128x128xbf16>
    %cst = arith.constant dense<0.000000e+00> : vector<32x128xf32>
    %6 = tpu.matmul %3, %5, %cst {dimension_numbers = #tpu.dot_dimension_numbers<[1], [0], [0], [1], [0, 0, 1, 1], [], []>} : vector<32x128xbf16>, vector<128x128xbf16>, vector<32x128xf32> -> vector<32x128xf32>
    %c0_8 = arith.constant 0 : index
    %c0_9 = arith.constant 0 : index
    %c0_10 = arith.constant 0 : index
    %7 = vector.load %arg3[%c0_8, %c0_9, %c0_10] : memref<2x1x128xf32, #tpu.memory_space<vmem>>, vector<1x1x128xf32>
    %8 = vector.shape_cast %7 : vector<1x1x128xf32> to vector<1x128xf32>
    %9 = vector.broadcast %8 : vector<1x128xf32> to vector<32x128xf32>
    %10 = arith.addf %6, %9 : vector<32x128xf32>
    %cst_11 = arith.constant 0.000000e+00 : f32
    %11 = vector.broadcast %cst_11 : f32 to vector<32x128xf32>
    %12 = arith.maximumf %10, %11 : vector<32x128xf32>
    %13 = arith.truncf %12 : vector<32x128xf32> to vector<32x128xbf16>
    %c0_12 = arith.constant 0 : index
    %c0_13 = arith.constant 0 : index
    %14 = vector.load %arg7[%c0_12, %c0_13] : memref<32x128xbf16, #tpu.memory_space<vmem>>, vector<32x128xbf16>
    tpu.vector_store %arg7[%c0_12, %c0_13], %13 {strides = array<i32>} : memref<32x128xbf16, #tpu.memory_space<vmem>>, vector<32x128xbf16>,
    %c0_14 = arith.constant 0 : index
    %c0_15 = arith.constant 0 : index
    %15 = vector.load %arg7[%c0_14, %c0_15] : memref<32x128xbf16, #tpu.memory_space<vmem>>, vector<32x128xbf16>
    %c1 = arith.constant 1 : index
    %c0_16 = arith.constant 0 : index
    %c0_17 = arith.constant 0 : index
    %16 = vector.load %arg2[%c1, %c0_16, %c0_17] : memref<2x128x128xbf16, #tpu.memory_space<vmem>>, vector<1x128x128xbf16>
    %17 = vector.shape_cast %16 : vector<1x128x128xbf16> to vector<128x128xbf16>
    %cst_18 = arith.constant dense<0.000000e+00> : vector<32x128xf32>
    %18 = tpu.matmul %15, %17, %cst_18 {dimension_numbers = #tpu.dot_dimension_numbers<[1], [0], [0], [1], [0, 0, 1, 1], [], []>} : vector<32x128xbf16>, vector<128x128xbf16>, vector<32x128xf32> -> vector<32x128xf32>
    %c1_19 = arith.constant 1 : index
    %c0_20 = arith.constant 0 : index
    %c0_21 = arith.constant 0 : index
    %19 = vector.load %arg3[%c1_19, %c0_20, %c0_21] : memref<2x1x128xf32, #tpu.memory_space<vmem>>, vector<1x1x128xf32>
    %20 = vector.shape_cast %19 : vector<1x1x128xf32> to vector<1x128xf32>
    %21 = vector.broadcast %20 : vector<1x128xf32> to vector<32x128xf32>
    %22 = arith.addf %18, %21 : vector<32x128xf32>
    %cst_22 = arith.constant 0.000000e+00 : f32
    %23 = vector.broadcast %cst_22 : f32 to vector<32x128xf32>
    %24 = arith.maximumf %22, %23 : vector<32x128xf32>
    %25 = arith.truncf %24 : vector<32x128xf32> to vector<32x128xbf16>
    %c0_23 = arith.constant 0 : index
    %c0_24 = arith.constant 0 : index
    %26 = vector.load %arg7[%c0_23, %c0_24] : memref<32x128xbf16, #tpu.memory_space<vmem>>, vector<32x128xbf16>
    tpu.vector_store %arg7[%c0_23, %c0_24], %25 {strides = array<i32>} : memref<32x128xbf16, #tpu.memory_space<vmem>>, vector<32x128xbf16>,
    %c0_25 = arith.constant 0 : index
    %c0_26 = arith.constant 0 : index
    %27 = vector.load %arg7[%c0_25, %c0_26] : memref<32x128xbf16, #tpu.memory_space<vmem>>, vector<32x128xbf16>
    %c0_27 = arith.constant 0 : index
    %c0_28 = arith.constant 0 : index
    %28 = vector.load %arg4[%c0_27, %c0_28] : memref<128x128xbf16, #tpu.memory_space<vmem>>, vector<128x128xbf16>
    %cst_29 = arith.constant dense<0.000000e+00> : vector<32x128xf32>
    %29 = tpu.matmul %27, %28, %cst_29 {dimension_numbers = #tpu.dot_dimension_numbers<[1], [0], [0], [1], [0, 0, 1, 1], [], []>} : vector<32x128xbf16>, vector<128x128xbf16>, vector<32x128xf32> -> vector<32x128xf32>
    %c0_30 = arith.constant 0 : index
    %c0_31 = arith.constant 0 : index
    %30 = vector.load %arg5[%c0_30, %c0_31] : memref<1x128xf32, #tpu.memory_space<vmem>>, vector<1x128xf32>
    %31 = vector.broadcast %30 : vector<1x128xf32> to vector<32x128xf32>
    %32 = arith.addf %29, %31 : vector<32x128xf32>
    %c0_32 = arith.constant 0 : index
    %c0_33 = arith.constant 0 : index
    %33 = vector.load %arg6[%c0_32, %c0_33] : memref<32x128xf32, #tpu.memory_space<vmem>>, vector<32x128xf32>
    tpu.vector_store %arg6[%c0_32, %c0_33], %32 {strides = array<i32>} : memref<32x128xf32, #tpu.memory_space<vmem>>, vector<32x128xf32>,
    return
  }
  func.func @transform_0(%arg0: i32) -> (i32, i32) {
    %c0_i32 = arith.constant 0 : i32
    %c0_i32_0 = arith.constant 0 : i32
    return %arg0, %c0_i32 : i32, i32
  }
  func.func @transform_1(%arg0: i32) -> (i32, i32, i32) {
    %c0_i32 = arith.constant 0 : i32
    %c0_i32_0 = arith.constant 0 : i32
    %c0_i32_1 = arith.constant 0 : i32
    %c0_i32_2 = arith.constant 0 : i32
    return %c0_i32, %c0_i32_0, %c0_i32_1 : i32, i32, i32
  }
  func.func @transform_2(%arg0: i32) -> (i32, i32, i32) {
    %c0_i32 = arith.constant 0 : i32
    %c0_i32_0 = arith.constant 0 : i32
    %c0_i32_1 = arith.constant 0 : i32
    %c0_i32_2 = arith.constant 0 : i32
    return %c0_i32, %c0_i32_0, %c0_i32_1 : i32, i32, i32
  }
  func.func @transform_3(%arg0: i32) -> (i32, i32) {
    %c0_i32 = arith.constant 0 : i32
    %c0_i32_0 = arith.constant 0 : i32
    %c0_i32_1 = arith.constant 0 : i32
    return %c0_i32, %c0_i32_0 : i32, i32
  }
  func.func @transform_4(%arg0: i32) -> (i32, i32) {
    %c0_i32 = arith.constant 0 : i32
    %c0_i32_0 = arith.constant 0 : i32
    %c0_i32_1 = arith.constant 0 : i32
    return %c0_i32, %c0_i32_0 : i32, i32
  }
  func.func @transform_5(%arg0: i32) -> (i32, i32) {
    %c0_i32 = arith.constant 0 : i32
    %c0_i32_0 = arith.constant 0 : i32
    return %arg0, %c0_i32 : i32, i32
  }
}

</mosaic_0001>

<llo_original>
// kernel: tpu_custom_call.1
$region0: #{tpu_custom_call.1}
  #allocation0 [shape = 'u32[]', space=smem, size = 0x4, offset = 0x4, fixed_abs, tag = 'smem constant byte address 0x4 - core index']
  #allocation1 [shape = 'u32[144,128]{1,0:T(1,128)}', space=vmem, size = 0x12000, scoped, tag = 'internal scratch']
  #allocation2 [shape = 'bf16[32,128]{1,0:T(16,128)(2,1)}', space=vmem, size = 0x2000, scoped, tag = 'scratch operand']
  %s0 = inlined_call_operand.hbm [shape: f32[64,128], index: 0, kind: input, shape index: {}]
  %s1 = inlined_call_operand.hbm [shape: bf16[2,128,128], index: 1, kind: input, shape index: {}]
  %s2 = inlined_call_operand.vmem [shape: f32[2,1,128], index: 2, kind: input, shape index: {}]
  %s3 = inlined_call_operand.hbm [shape: bf16[128,128], index: 3, kind: input, shape index: {}]
  %s4 = inlined_call_operand.vmem [shape: f32[1,128], index: 4, kind: input, shape index: {}]
  %s5 = inlined_call_operand.hbm [shape: f32[64,128], index: 5, kind: output, shape index: {}]
  %s6 = sld [smem:[#allocation0]]
  $region65: #{tpu_custom_call.1} parent=0
    _
  %s8 = ssub.s32 1, %s6
  %s9 = scalar_select 0, %s8, %s6
  $region1: #{tpu_custom_call.1} parent=0
    #allocation3 [shape = 'u8[32768]{0}', space=vmem, size = 0x8000, scoped, tag = 'input window, operand 0']
    #allocation4 [shape = 's32[2]{0}', space=sflag, size = 0x8, scoped, tag = 'scoped memory for tpu_custom_call.1']
    #allocation5 [shape = 's32[2]{0}', space=sflag, size = 0x8, scoped, tag = 'scoped memory for tpu_custom_call.1']
    #allocation6 [shape = 'u8[65536]{0}', space=vmem, size = 0x10000, scoped, tag = 'input window, operand 1, single buffered']
    #allocation7 [shape = 's32[1]{0}', space=sflag, size = 0x4, scoped, tag = 'scoped memory for tpu_custom_call.1']
    #allocation8 [shape = 'u8[32768]{0}', space=vmem, size = 0x8000, scoped, tag = 'input window, operand 3, single buffered']
    #allocation9 [shape = 'u8[32768]{0}', space=vmem, size = 0x8000, scoped, tag = 'output window, operand 0']
    %10 = vsyncpa [#allocation4], 0
    %s11 = scalar_lea.sflag [#allocation4], 1
    %12 = vsyncpa %s11, 0
    %13 = vsyncpa [#allocation7], 0
    %14 = vsyncpa [#allocation5], 0
    %s15 = scalar_lea.sflag [#allocation5], 1
    %16 = vsyncpa %s15, 0
    loop: start=0, step=1, limit=4
    $region2: #{tpu_custom_call.1} parent=1 // loop_pre_header
      _
    $region3: #{tpu_custom_call.1} parent=1 // loop_header
      %s18 = sphi 0, %s22
      %p19 = scmp.ge.s32.totalorder %s18, 4
      %s28 = sphi 0, %s30
      %s31 = sphi 0, %s28
      %s32 = sphi 0, %s31
      %s48 = sphi 0, %s32
      %s52 = sphi 0, %s52
      %s54 = sphi 0, %s52
      %s55 = sphi 0, %s54
      %s69 = sphi 0, %s55
      %s73 = sphi 0, %s73
      %s75 = sphi 0, %s73
      %s76 = sphi 0, %s75
      %s90 = sphi 0, %s76
      %s94 = sphi 0, %s94
      %s96 = sphi 0, %s94
      %s97 = sphi 0, %s96
      %s111 = sphi 0, %s97
      %s115 = sphi 0, %s115
      %s117 = sphi 0, %s115
      %s118 = sphi 0, %s117
      %s132 = sphi 0, %s118
      %s138 = sphi 0, %s140
      %s141 = sphi 0, %s138
      %s142 = sphi 0, %s141
      %s158 = sphi 0, %s142
    $region4: #{tpu_custom_call.1} parent=1 // loop_header_branch
      %21 = sbr.rel (%p19) target = $region8
    $region5: #{tpu_custom_call.1} parent=1 // loop_body
      %s23 = ssub.s32 %s18, 1
      %s24 = ssub.s32 %s18, 2
      %s25 = sadd.s32 %s18, 1
      %s26 = ssub.s32 %s18, %s25
      %p27 = scmp.eq.s32.totalorder %s26, 0
      %s29 = sadd.s32 %s28, 1
      %s30 = scalar_select %p27, %s28, %s29
      %p33 = pneg %p27
      %p34 = scmp.eq.s32.totalorder %s18, 1
      %p35 = por %p33, %p34
      %p36 = scmp.ne.s32.totalorder %s28, %s31
      %p37 = scmp.eq.s32.totalorder %s18, 0
      %p38 = por %p36, %p37
      %p39 = scmp.ne.s32.totalorder %s28, %s31
      %p40 = scmp.eq.s32.totalorder %s23, 1
      %p41 = por %p39, %p40
      %p42 = scmp.ne.s32.totalorder %s31, %s32
      %p43 = scmp.eq.s32.totalorder %s23, 0
      %p44 = por %p42, %p43
      %p45 = scmp.ne.s32.totalorder %s31, %s32
      %p46 = scmp.eq.s32.totalorder %s24, 1
      %p47 = por %p45, %p46
      %p49 = scmp.ne.s32.totalorder %s32, %s48
      %p50 = scmp.eq.s32.totalorder %s24, 0
      %p51 = por %p49, %p50
      %s53 = sadd.s32 %s52, 1
      %p56 = scmp.eq.s32.totalorder %s18, 1
      %p57 = scmp.ne.s32.totalorder %s52, %s54
      %p58 = scmp.eq.s32.totalorder %s18, 0
      %p59 = por %p57, %p58
      %p60 = scmp.ne.s32.totalorder %s52, %s54
      %p61 = scmp.eq.s32.totalorder %s23, 1
      %p62 = por %p60, %p61
      %p63 = scmp.ne.s32.totalorder %s54, %s55
      %p64 = scmp.eq.s32.totalorder %s23, 0
      %p65 = por %p63, %p64
      %p66 = scmp.ne.s32.totalorder %s54, %s55
      %p67 = scmp.eq.s32.totalorder %s24, 1
      %p68 = por %p66, %p67
      %p70 = scmp.ne.s32.totalorder %s55, %s69
      %p71 = scmp.eq.s32.totalorder %s24, 0
      %p72 = por %p70, %p71
      %s74 = sadd.s32 %s73, 1
      %p77 = scmp.eq.s32.totalorder %s18, 1
      %p78 = scmp.ne.s32.totalorder %s73, %s75
      %p79 = scmp.eq.s32.totalorder %s18, 0
      %p80 = por %p78, %p79
      %p81 = scmp.ne.s32.totalorder %s73, %s75
      %p82 = scmp.eq.s32.totalorder %s23, 1
      %p83 = por %p81, %p82
      %p84 = scmp.ne.s32.totalorder %s75, %s76
      %p85 = scmp.eq.s32.totalorder %s23, 0
      %p86 = por %p84, %p85
      %p87 = scmp.ne.s32.totalorder %s75, %s76
      %p88 = scmp.eq.s32.totalorder %s24, 1
      %p89 = por %p87, %p88
      %p91 = scmp.ne.s32.totalorder %s76, %s90
      %p92 = scmp.eq.s32.totalorder %s24, 0
      %p93 = por %p91, %p92
      %s95 = sadd.s32 %s94, 1
      %p98 = scmp.eq.s32.totalorder %s18, 1
      %p99 = scmp.ne.s32.totalorder %s94, %s96
      %p100 = scmp.eq.s32.totalorder %s18, 0
      %p101 = por %p99, %p100
      %p102 = scmp.ne.s32.totalorder %s94, %s96
      %p103 = scmp.eq.s32.totalorder %s23, 1
      %p104 = por %p102, %p103
      %p105 = scmp.ne.s32.totalorder %s96, %s97
      %p106 = scmp.eq.s32.totalorder %s23, 0
      %p107 = por %p105, %p106
      %p108 = scmp.ne.s32.totalorder %s96, %s97
      %p109 = scmp.eq.s32.totalorder %s24, 1
      %p110 = por %p108, %p109
      %p112 = scmp.ne.s32.totalorder %s97, %s111
      %p113 = scmp.eq.s32.totalorder %s24, 0
      %p114 = por %p112, %p113
      %s116 = sadd.s32 %s115, 1
      %p119 = scmp.eq.s32.totalorder %s18, 1
      %p120 = scmp.ne.s32.totalorder %s115, %s117
      %p121 = scmp.eq.s32.totalorder %s18, 0
      %p122 = por %p120, %p121
      %p123 = scmp.ne.s32.totalorder %s115, %s117
      %p124 = scmp.eq.s32.totalorder %s23, 1
      %p125 = por %p123, %p124
      %p126 = scmp.ne.s32.totalorder %s117, %s118
      %p127 = scmp.eq.s32.totalorder %s23, 0
      %p128 = por %p126, %p127
      %p129 = scmp.ne.s32.totalorder %s117, %s118
      %p130 = scmp.eq.s32.totalorder %s24, 1
      %p131 = por %p129, %p130
      %p133 = scmp.ne.s32.totalorder %s118, %s132
      %p134 = scmp.eq.s32.totalorder %s24, 0
      %p135 = por %p133, %p134
      %s136 = ssub.s32 %s18, %s25
      %p137 = scmp.eq.s32.totalorder %s136, 0
      %s139 = sadd.s32 %s138, 1
      %s140 = scalar_select %p137, %s138, %s139
      %p143 = pneg %p137
      %p144 = scmp.eq.s32.totalorder %s18, 1
      %p145 = por %p143, %p144
      %p146 = scmp.ne.s32.totalorder %s138, %s141
      %p147 = scmp.eq.s32.totalorder %s18, 0
      %p148 = por %p146, %p147
      %p149 = scmp.ne.s32.totalorder %s138, %s141
      %p150 = scmp.eq.s32.totalorder %s23, 1
      %p151 = por %p149, %p150
      %p152 = scmp.ne.s32.totalorder %s141, %s142
      %p153 = scmp.eq.s32.totalorder %s23, 0
      %p154 = por %p152, %p153
      %p155 = scmp.ne.s32.totalorder %s141, %s142
      %p156 = scmp.eq.s32.totalorder %s24, 1
      %p157 = por %p155, %p156
      %p159 = scmp.ne.s32.totalorder %s142, %s158
      %p160 = scmp.eq.s32.totalorder %s24, 0
      %p161 = por %p159, %p160
      %p162 = scmp.le.s32.totalorder 1, %s18
      %p163 = scmp.lt.s32.totalorder %s18, 3
      %p164 = pnand %p162, %p163
      %p165 = pneg %p164
      // Predicated region
      $region9: #{tpu_custom_call.1} parent=5 // pred_check
        _
      $region10: #{tpu_custom_call.1} parent=5 // pred_check_branch
        %167 = sbr.rel (%p164) target = $region12
      $region11: #{tpu_custom_call.1} parent=5 // pred_region
        %s168 = ssub.s32 %s18, 1
        // Predicated region
        $region13: #{tpu_custom_call.1} parent=11 // pred_check
          %p169 = pneg %p65
        $region14: #{tpu_custom_call.1} parent=11 // pred_check_branch
          %171 = sbr.rel (%p169) target = $region16
        $region15: #{tpu_custom_call.1} parent=11 // pred_region
          %s173 = ssub.s32 2048, 2048
          %174 = vsyncadd [#allocation7], %s173
          %s175 = sshll.u32 [#allocation6], 4
          %s176 = int_to_ptr.vmem [resolvable:$true] %s175
          %181 = dma.hbm_to_vmem [thread:$0]  %s1, 2048, %s176, [#allocation7], 64, 64, 4
        $region16: #{tpu_custom_call.1} parent=11 // pred_fallthru
          _
        // Predicated region
        $region17: #{tpu_custom_call.1} parent=11 // pred_check
          %p182 = pneg %p86
        $region18: #{tpu_custom_call.1} parent=11 // pred_check_branch
          %184 = sbr.rel (%p182) target = $region20
        $region19: #{tpu_custom_call.1} parent=11 // pred_region
          _
        $region20: #{tpu_custom_call.1} parent=11 // pred_fallthru
          _
        // Predicated region
        $region21: #{tpu_custom_call.1} parent=11 // pred_check
          %p185 = pneg %p107
        $region22: #{tpu_custom_call.1} parent=11 // pred_check_branch
          %187 = sbr.rel (%p185) target = $region24
        $region23: #{tpu_custom_call.1} parent=11 // pred_region
          %s189 = ssub.s32 1024, 1024
          %190 = vsyncadd [#allocation7], %s189
          %s191 = sshll.u32 [#allocation8], 4
          %s192 = int_to_ptr.vmem [resolvable:$true] %s191
          %197 = dma.hbm_to_vmem [thread:$0]  %s3, 1024, %s192, [#allocation7], 64, 64, 4
        $region24: #{tpu_custom_call.1} parent=11 // pred_fallthru
          _
        // Predicated region
        $region25: #{tpu_custom_call.1} parent=11 // pred_check
          %p198 = pneg %p128
        $region26: #{tpu_custom_call.1} parent=11 // pred_check_branch
          %200 = sbr.rel (%p198) target = $region28
        $region27: #{tpu_custom_call.1} parent=11 // pred_region
          _
        $region28: #{tpu_custom_call.1} parent=11 // pred_fallthru
          _
      $region12: #{tpu_custom_call.1} parent=5 // pred_fallthru
        _
      %p201 = scmp.lt.s32.totalorder %s18, 2
      // Predicated region
      $region29: #{tpu_custom_call.1} parent=5 // pred_check
        %p202 = pneg %p201
      $region30: #{tpu_custom_call.1} parent=5 // pred_check_branch
        %204 = sbr.rel (%p202) target = $region32
      $region31: #{tpu_custom_call.1} parent=5 // pred_region
        // Predicated region
        $region33: #{tpu_custom_call.1} parent=31 // pred_check
          %p205 = pneg %p38
        $region34: #{tpu_custom_call.1} parent=31 // pred_check_branch
          %207 = sbr.rel (%p205) target = $region36
        $region35: #{tpu_custom_call.1} parent=31 // pred_region
          %s208 = sand.u32 %s28, 1
          %s209 = scalar_lea.sflag [#allocation4], %s208
          %s210 = sand.u32 %s28, 1
          %s211 = smul.addr %s210, 32
          %s212 = scalar_lea.vmem [#allocation3], %s211
          %s213 = smul.u32 4, %s18
          %s215 = ssub.s32 512, 512
          %216 = vsyncadd %s209, %s215
          %s217 = smul.addr %s213, 128
          %s218 = scalar_lea.hbm %s0, %s217
          %s219 = sshll.u32 %s212, 4
          %s220 = int_to_ptr.vmem [resolvable:$true] %s219
          %225 = dma.hbm_to_vmem [thread:$0]  %s218, 512, %s220, %s209, 128, 128, 8
        $region36: #{tpu_custom_call.1} parent=31 // pred_fallthru
          _
      $region32: #{tpu_custom_call.1} parent=5 // pred_fallthru
        _
      %p226 = scmp.le.s32.totalorder 1, %s18
      %p227 = scmp.lt.s32.totalorder %s18, 3
      %p228 = pnand %p226, %p227
      %p229 = pneg %p228
      // Predicated region
      $region37: #{tpu_custom_call.1} parent=5 // pred_check
        _
      $region38: #{tpu_custom_call.1} parent=5 // pred_check_branch
        %231 = sbr.rel (%p228) target = $region40
      $region39: #{tpu_custom_call.1} parent=5 // pred_region
        %s232 = ssub.s32 %s18, 1
        %s233 = sand.u32 %s31, 1
        %s234 = scalar_lea.sflag [#allocation4], %s233
        %s235 = sand.u32 %s31, 1
        %s236 = smul.addr %s235, 32
        %s237 = scalar_lea.vmem [#allocation3], %s236
        // Predicated region
        $region41: #{tpu_custom_call.1} parent=39 // pred_check
          %p238 = pneg %p44
        $region42: #{tpu_custom_call.1} parent=39 // pred_check_branch
          %240 = sbr.rel (%p238) target = $region44
        $region43: #{tpu_custom_call.1} parent=39 // pred_region
          %241 = dma.done %s234, 512
        $region44: #{tpu_custom_call.1} parent=39 // pred_fallthru
          _
        // Predicated region
        $region45: #{tpu_custom_call.1} parent=39 // pred_check
          %p242 = pneg %p65
        $region46: #{tpu_custom_call.1} parent=39 // pred_check_branch
          %244 = sbr.rel (%p242) target = $region48
        $region47: #{tpu_custom_call.1} parent=39 // pred_region
          %245 = dma.done [#allocation7], 2048
        $region48: #{tpu_custom_call.1} parent=39 // pred_fallthru
          _
        // Predicated region
        $region49: #{tpu_custom_call.1} parent=39 // pred_check
          %p246 = pneg %p107
        $region50: #{tpu_custom_call.1} parent=39 // pred_check_branch
          %248 = sbr.rel (%p246) target = $region52
        $region51: #{tpu_custom_call.1} parent=39 // pred_region
          %249 = dma.done [#allocation7], 1024
        $region52: #{tpu_custom_call.1} parent=39 // pred_fallthru
          _
        %s250 = sand.u32 %s31, 1
        %s251 = scalar_lea.sflag [#allocation4], %s250
        %s252 = sand.u32 %s31, 1
        %s253 = smul.addr %s252, 32
        %s254 = scalar_lea.vmem [#allocation3], %s253
        %p255 = pneg %p44
        %p256 = pneg %p41
        %p257 = pneg %p65
        %p258 = pneg %p62
        %p259 = pneg %p86
        %p260 = pneg %p83
        %p261 = pneg %p107
        %p262 = pneg %p104
        %p263 = pneg %p128
        %p264 = pneg %p125
        %p265 = pneg %p154
        %p266 = pneg %p151
        %s267 = sand.u32 %s141, 1
        %s268 = scalar_lea.sflag [#allocation5], %s267
        %s269 = sand.u32 %s141, 1
        %s270 = smul.addr %s269, 32
        %s271 = scalar_lea.vmem [#allocation9], %s270
        %s272 = smul.u32 4, %s23
        %s273 = smul.u32 4, %s23
        %v275 = vld [vmem:[%s237] sm:$0xff]
        %v276 = vld [vmem:[%s237 + $0x8] sm:$0xff]
        %v277 = vld [vmem:[%s237 + $0x10] sm:$0xff]
        %v278 = vld [vmem:[%s237 + $0x18] sm:$0xff]
        %v279 = vpack.c.bf16 %v276, %v275
        %v280 = vpack.c.bf16 %v278, %v277
        %281 = vst [vmem:[#allocation2] sm:$0xff] %v279
        %282 = vst [vmem:[#allocation2 + $0x8] sm:$0xff] %v280
        %v283 = vld [vmem:[#allocation2] sm:$0xff]
        %v284 = vld [vmem:[#allocation2 + $0x8] sm:$0xff]
        %v285 = vld [vmem:[#allocation6] sm:$0xf]
        %v286 = vld [vmem:[#allocation6 + $0x4] sm:$0xf]
        %v287 = vld [vmem:[#allocation6 + $0x8] sm:$0xf]
        %v288 = vld [vmem:[#allocation6 + $0xc] sm:$0xf]
        %v289 = vld [vmem:[#allocation6 + $0x10] sm:$0xf]
        %v290 = vld [vmem:[#allocation6 + $0x14] sm:$0xf]
        %v291 = vld [vmem:[#allocation6 + $0x18] sm:$0xf]
        %v292 = vld [vmem:[#allocation6 + $0x1c] sm:$0xf]
        %v293 = vld [vmem:[#allocation6 + $0x20] sm:$0xf]
        %v294 = vld [vmem:[#allocation6 + $0x24] sm:$0xf]
        %v295 = vld [vmem:[#allocation6 + $0x28] sm:$0xf]
        %v296 = vld [vmem:[#allocation6 + $0x2c] sm:$0xf]
        %v297 = vld [vmem:[#allocation6 + $0x30] sm:$0xf]
        %v298 = vld [vmem:[#allocation6 + $0x34] sm:$0xf]
        %v299 = vld [vmem:[#allocation6 + $0x38] sm:$0xf]
        %v300 = vld [vmem:[#allocation6 + $0x3c] sm:$0xf]
        %v301 = vld [vmem:[%s2] sm:$0x1]
        %v303 = vlaneseq
        %v304 = vshrl.u32 %v303, 7
        %v305 = vsub.s32 0, %v304
        %v306 = vrot.slane %v301, %v305
        %v324 = vunpack.c.l.b16 %v285
        %v325 = vunpack.c.l.b16 %v286
        %v326 = vunpack.c.l.b16 %v287
        %v327 = vunpack.c.l.b16 %v288
        %v328 = vunpack.c.l.b16 %v289
        %v329 = vunpack.c.l.b16 %v290
        %v330 = vunpack.c.l.b16 %v291
        %v331 = vunpack.c.l.b16 %v292
        %v332 = vunpack.c.l.b16 %v293
        %v333 = vunpack.c.l.b16 %v294
        %v334 = vunpack.c.l.b16 %v295
        %v335 = vunpack.c.l.b16 %v296
        %v336 = vunpack.c.l.b16 %v297
        %v337 = vunpack.c.l.b16 %v298
        %v338 = vunpack.c.l.b16 %v299
        %v339 = vunpack.c.l.b16 %v300
        %v340 = vpack.c.b16 %v325, %v324
        %v341 = vpack.c.b16 %v327, %v326
        %v342 = vpack.c.b16 %v329, %v328
        %v343 = vpack.c.b16 %v331, %v330
        %v344 = vpack.c.b16 %v333, %v332
        %v345 = vpack.c.b16 %v335, %v334
        %v346 = vpack.c.b16 %v337, %v336
        %v347 = vpack.c.b16 %v339, %v338
        %356 = vmatprep.subr.bf16.mxu0 0
        %357 = vmatpush1.bf16.msra.mxu0 %v340
        %358 = vmatprep.subr.bf16.mxu0 0
        %359 = vmatpush1.bf16.msra.mxu0 %v341
        %360 = vmatprep.subr.bf16.mxu0 0
        %361 = vmatpush1.bf16.msra.mxu0 %v342
        %362 = vmatprep.subr.bf16.mxu0 0
        %363 = vmatpush1.bf16.msra.mxu0 %v343
        %364 = vmatprep.subr.bf16.mxu0 0
        %365 = vmatpush1.bf16.msra.mxu0 %v344
        %366 = vmatprep.subr.bf16.mxu0 0
        %367 = vmatpush1.bf16.msra.mxu0 %v345
        %368 = vmatprep.subr.bf16.mxu0 0
        %369 = vmatpush1.bf16.msra.mxu0 %v346
        %370 = vmatprep.subr.bf16.mxu0 0
        %371 = vmatpush1.bf16.msra.mxu0 %v347
        %372 = vmatprep.subr.bf16.mxu0 0
        %373 = vmatpush1.bf16.msra.mxu0 0
        %374 = vmatprep.subr.bf16.mxu0 0
        %375 = vmatpush1.bf16.msra.mxu0 0
        %376 = vmatprep.subr.bf16.mxu0 0
        %377 = vmatpush1.bf16.msra.mxu0 0
        %378 = vmatprep.subr.bf16.mxu0 0
        %379 = vmatpush1.bf16.msra.mxu0 0
        %380 = vmatprep.subr.bf16.mxu0 0
        %381 = vmatpush1.bf16.msra.mxu0 0
        %382 = vmatprep.subr.bf16.mxu0 0
        %383 = vmatpush1.bf16.msra.mxu0 0
        %384 = vmatprep.subr.bf16.mxu0 0
        %385 = vmatpush1.bf16.msra.mxu0 0
        %386 = vmatprep.subr.bf16.mxu0 0
        %387 = vmatpush1.bf16.msra.mxu0 0
        %388 = vmatprep.mubr.bf16.mxu0 0
        %389 = vmatmul.mubr.bf16.gmra.mrb[0].mxu0 %v283
        %v390 = vpop.f32.mrb[0].mxu0
        %v391 = vadd.f32 %v306, %v390
        %v392 = vpop.f32.mrb[0].mxu0
        %v393 = vpop.f32.mrb[0].mxu0
        %v394 = vadd.f32 %v306, %v393
        %v395 = vpop.f32.mrb[0].mxu0
        %396 = vmatprep.mubr.bf16.mxu0 0
        %397 = vmatmul.mubr.bf16.gmra.mrb[0].mxu0 %v284
        %v398 = vpop.f32.mrb[0].mxu0
        %v399 = vadd.f32 %v306, %v398
        %v400 = vpop.f32.mrb[0].mxu0
        %v401 = vpop.f32.mrb[0].mxu0
        %v402 = vadd.f32 %v306, %v401
        %v403 = vpop.f32.mrb[0].mxu0
        %404 = vdwg.mxu0
        %v405 = vmax.f32 %v391, 0.0
        %v406 = vmax.f32 %v394, 0.0
        %v407 = vmax.f32 %v399, 0.0
        %v408 = vmax.f32 %v402, 0.0
        %v409 = vpack.c.bf16 %v406, %v405
        %v410 = vpack.c.bf16 %v408, %v407
        %411 = vst [vmem:[#allocation2] sm:$0xff] %v409
        %412 = vst [vmem:[#allocation2 + $0x8] sm:$0xff] %v410
        %v413 = vld [vmem:[#allocation2] sm:$0xff]
        %v414 = vld [vmem:[#allocation2 + $0x8] sm:$0xff]
        %s415 = scalar_lea.vmem [#allocation6], 64
        %v416 = vld [vmem:[%s415] sm:$0xf]
        %v417 = vld [vmem:[%s415 + $0x4] sm:$0xf]
        %v418 = vld [vmem:[%s415 + $0x8] sm:$0xf]
        %v419 = vld [vmem:[%s415 + $0xc] sm:$0xf]
        %v420 = vld [vmem:[%s415 + $0x10] sm:$0xf]
        %v421 = vld [vmem:[%s415 + $0x14] sm:$0xf]
        %v422 = vld [vmem:[%s415 + $0x18] sm:$0xf]
        %v423 = vld [vmem:[%s415 + $0x1c] sm:$0xf]
        %v424 = vld [vmem:[%s415 + $0x20] sm:$0xf]
        %v425 = vld [vmem:[%s415 + $0x24] sm:$0xf]
        %v426 = vld [vmem:[%s415 + $0x28] sm:$0xf]
        %v427 = vld [vmem:[%s415 + $0x2c] sm:$0xf]
        %v428 = vld [vmem:[%s415 + $0x30] sm:$0xf]
        %v429 = vld [vmem:[%s415 + $0x34] sm:$0xf]
        %v430 = vld [vmem:[%s415 + $0x38] sm:$0xf]
        %v431 = vld [vmem:[%s415 + $0x3c] sm:$0xf]
        %s432 = scalar_lea.vmem %s2, 1
        %v433 = vld [vmem:[%s432] sm:$0x1]
        %v435 = vlaneseq
        %v436 = vshrl.u32 %v435, 7
        %v437 = vsub.s32 0, %v436
        %v438 = vrot.slane %v433, %v437
        %v456 = vunpack.c.l.b16 %v416
        %v457 = vunpack.c.l.b16 %v417
        %v458 = vunpack.c.l.b16 %v418
        %v459 = vunpack.c.l.b16 %v419
        %v460 = vunpack.c.l.b16 %v420
        %v461 = vunpack.c.l.b16 %v421
        %v462 = vunpack.c.l.b16 %v422
        %v463 = vunpack.c.l.b16 %v423
        %v464 = vunpack.c.l.b16 %v424
        %v465 = vunpack.c.l.b16 %v425
        %v466 = vunpack.c.l.b16 %v426
        %v467 = vunpack.c.l.b16 %v427
        %v468 = vunpack.c.l.b16 %v428
        %v469 = vunpack.c.l.b16 %v429
        %v470 = vunpack.c.l.b16 %v430
        %v471 = vunpack.c.l.b16 %v431
        %v472 = vpack.c.b16 %v457, %v456
        %v473 = vpack.c.b16 %v459, %v458
        %v474 = vpack.c.b16 %v461, %v460
        %v475 = vpack.c.b16 %v463, %v462
        %v476 = vpack.c.b16 %v465, %v464
        %v477 = vpack.c.b16 %v467, %v466
        %v478 = vpack.c.b16 %v469, %v468
        %v479 = vpack.c.b16 %v471, %v470
        %488 = vmatprep.subr.bf16.mxu0 0
        %489 = vmatpush1.bf16.msra.mxu0 %v472
        %490 = vmatprep.subr.bf16.mxu0 0
        %491 = vmatpush1.bf16.msra.mxu0 %v473
        %492 = vmatprep.subr.bf16.mxu0 0
        %493 = vmatpush1.bf16.msra.mxu0 %v474
        %494 = vmatprep.subr.bf16.mxu0 0
        %495 = vmatpush1.bf16.msra.mxu0 %v475
        %496 = vmatprep.subr.bf16.mxu0 0
        %497 = vmatpush1.bf16.msra.mxu0 %v476
        %498 = vmatprep.subr.bf16.mxu0 0
        %499 = vmatpush1.bf16.msra.mxu0 %v477
        %500 = vmatprep.subr.bf16.mxu0 0
        %501 = vmatpush1.bf16.msra.mxu0 %v478
        %502 = vmatprep.subr.bf16.mxu0 0
        %503 = vmatpush1.bf16.msra.mxu0 %v479
        %504 = vmatprep.subr.bf16.mxu0 0
        %505 = vmatpush1.bf16.msra.mxu0 0
        %506 = vmatprep.subr.bf16.mxu0 0
        %507 = vmatpush1.bf16.msra.mxu0 0
        %508 = vmatprep.subr.bf16.mxu0 0
        %509 = vmatpush1.bf16.msra.mxu0 0
        %510 = vmatprep.subr.bf16.mxu0 0
        %511 = vmatpush1.bf16.msra.mxu0 0
        %512 = vmatprep.subr.bf16.mxu0 0
        %513 = vmatpush1.bf16.msra.mxu0 0
        %514 = vmatprep.subr.bf16.mxu0 0
        %515 = vmatpush1.bf16.msra.mxu0 0
        %516 = vmatprep.subr.bf16.mxu0 0
        %517 = vmatpush1.bf16.msra.mxu0 0
        %518 = vmatprep.subr.bf16.mxu0 0
        %519 = vmatpush1.bf16.msra.mxu0 0
        %520 = vmatprep.mubr.bf16.mxu0 0
        %521 = vmatmul.mubr.bf16.gmra.mrb[0].mxu0 %v413
        %v522 = vpop.f32.mrb[0].mxu0
        %v523 = vadd.f32 %v438, %v522
        %v524 = vpop.f32.mrb[0].mxu0
        %v525 = vpop.f32.mrb[0].mxu0
        %v526 = vadd.f32 %v438, %v525
        %v527 = vpop.f32.mrb[0].mxu0
        %528 = vmatprep.mubr.bf16.mxu0 0
        %529 = vmatmul.mubr.bf16.gmra.mrb[0].mxu0 %v414
        %v530 = vpop.f32.mrb[0].mxu0
        %v531 = vadd.f32 %v438, %v530
        %v532 = vpop.f32.mrb[0].mxu0
        %v533 = vpop.f32.mrb[0].mxu0
        %v534 = vadd.f32 %v438, %v533
        %v535 = vpop.f32.mrb[0].mxu0
        %536 = vdwg.mxu0
        %v537 = vmax.f32 %v523, 0.0
        %v538 = vmax.f32 %v526, 0.0
        %v539 = vmax.f32 %v531, 0.0
        %v540 = vmax.f32 %v534, 0.0
        %v541 = vpack.c.bf16 %v538, %v537
        %v542 = vpack.c.bf16 %v540, %v539
        %543 = vst [vmem:[#allocation2] sm:$0xff] %v541
        %544 = vst [vmem:[#allocation2 + $0x8] sm:$0xff] %v542
        %v545 = vld [vmem:[#allocation2] sm:$0xff]
        %v546 = vld [vmem:[#allocation2 + $0x8] sm:$0xff]
        %v547 = vld [vmem:[#allocation8] sm:$0xf]
        %v548 = vld [vmem:[#allocation8 + $0x4] sm:$0xf]
        %v549 = vld [vmem:[#allocation8 + $0x8] sm:$0xf]
        %v550 = vld [vmem:[#allocation8 + $0xc] sm:$0xf]
        %v551 = vld [vmem:[#allocation8 + $0x10] sm:$0xf]
        %v552 = vld [vmem:[#allocation8 + $0x14] sm:$0xf]
        %v553 = vld [vmem:[#allocation8 + $0x18] sm:$0xf]
        %v554 = vld [vmem:[#allocation8 + $0x1c] sm:$0xf]
        %v555 = vld [vmem:[#allocation8 + $0x20] sm:$0xf]
        %v556 = vld [vmem:[#allocation8 + $0x24] sm:$0xf]
        %v557 = vld [vmem:[#allocation8 + $0x28] sm:$0xf]
        %v558 = vld [vmem:[#allocation8 + $0x2c] sm:$0xf]
        %v559 = vld [vmem:[#allocation8 + $0x30] sm:$0xf]
        %v560 = vld [vmem:[#allocation8 + $0x34] sm:$0xf]
        %v561 = vld [vmem:[#allocation8 + $0x38] sm:$0xf]
        %v562 = vld [vmem:[#allocation8 + $0x3c] sm:$0xf]
        %v563 = vld [vmem:[%s4] sm:$0x1]
        %v565 = vlaneseq
        %v566 = vshrl.u32 %v565, 7
        %v567 = vsub.s32 0, %v566
        %v568 = vrot.slane %v563, %v567
        %v586 = vunpack.c.l.b16 %v547
        %v587 = vunpack.c.l.b16 %v548
        %v588 = vunpack.c.l.b16 %v549
        %v589 = vunpack.c.l.b16 %v550
        %v590 = vunpack.c.l.b16 %v551
        %v591 = vunpack.c.l.b16 %v552
        %v592 = vunpack.c.l.b16 %v553
        %v593 = vunpack.c.l.b16 %v554
        %v594 = vunpack.c.l.b16 %v555
        %v595 = vunpack.c.l.b16 %v556
        %v596 = vunpack.c.l.b16 %v557
        %v597 = vunpack.c.l.b16 %v558
        %v598 = vunpack.c.l.b16 %v559
        %v599 = vunpack.c.l.b16 %v560
        %v600 = vunpack.c.l.b16 %v561
        %v601 = vunpack.c.l.b16 %v562
        %v602 = vpack.c.b16 %v587, %v586
        %v603 = vpack.c.b16 %v589, %v588
        %v604 = vpack.c.b16 %v591, %v590
        %v605 = vpack.c.b16 %v593, %v592
        %v606 = vpack.c.b16 %v595, %v594
        %v607 = vpack.c.b16 %v597, %v596
        %v608 = vpack.c.b16 %v599, %v598
        %v609 = vpack.c.b16 %v601, %v600
        %618 = vmatprep.subr.bf16.mxu0 0
        %619 = vmatpush1.bf16.msra.mxu0 %v602
        %620 = vmatprep.subr.bf16.mxu0 0
        %621 = vmatpush1.bf16.msra.mxu0 %v603
        %622 = vmatprep.subr.bf16.mxu0 0
        %623 = vmatpush1.bf16.msra.mxu0 %v604
        %624 = vmatprep.subr.bf16.mxu0 0
        %625 = vmatpush1.bf16.msra.mxu0 %v605
        %626 = vmatprep.subr.bf16.mxu0 0
        %627 = vmatpush1.bf16.msra.mxu0 %v606
        %628 = vmatprep.subr.bf16.mxu0 0
        %629 = vmatpush1.bf16.msra.mxu0 %v607
        %630 = vmatprep.subr.bf16.mxu0 0
        %631 = vmatpush1.bf16.msra.mxu0 %v608
        %632 = vmatprep.subr.bf16.mxu0 0
        %633 = vmatpush1.bf16.msra.mxu0 %v609
        %634 = vmatprep.subr.bf16.mxu0 0
        %635 = vmatpush1.bf16.msra.mxu0 0
        %636 = vmatprep.subr.bf16.mxu0 0
        %637 = vmatpush1.bf16.msra.mxu0 0
        %638 = vmatprep.subr.bf16.mxu0 0
        %639 = vmatpush1.bf16.msra.mxu0 0
        %640 = vmatprep.subr.bf16.mxu0 0
        %641 = vmatpush1.bf16.msra.mxu0 0
        %642 = vmatprep.subr.bf16.mxu0 0
        %643 = vmatpush1.bf16.msra.mxu0 0
        %644 = vmatprep.subr.bf16.mxu0 0
        %645 = vmatpush1.bf16.msra.mxu0 0
        %646 = vmatprep.subr.bf16.mxu0 0
        %647 = vmatpush1.bf16.msra.mxu0 0
        %648 = vmatprep.subr.bf16.mxu0 0
        %649 = vmatpush1.bf16.msra.mxu0 0
        %650 = vmatprep.mubr.bf16.mxu0 0
        %651 = vmatmul.mubr.bf16.gmra.mrb[0].mxu0 %v545
        %v652 = vpop.f32.mrb[0].mxu0
        %v653 = vadd.f32 %v568, %v652
        %v654 = vpop.f32.mrb[0].mxu0
        %v655 = vpop.f32.mrb[0].mxu0
        %v656 = vadd.f32 %v568, %v655
        %v657 = vpop.f32.mrb[0].mxu0
        %658 = vmatprep.mubr.bf16.mxu0 0
        %659 = vmatmul.mubr.bf16.gmra.mrb[0].mxu0 %v546
        %v660 = vpop.f32.mrb[0].mxu0
        %v661 = vadd.f32 %v568, %v660
        %v662 = vpop.f32.mrb[0].mxu0
        %v663 = vpop.f32.mrb[0].mxu0
        %v664 = vadd.f32 %v568, %v663
        %v665 = vpop.f32.mrb[0].mxu0
        %666 = vdwg.mxu0
        %667 = vst [vmem:[%s271] sm:$0xff] %v653
        %668 = vst [vmem:[%s271 + $0x8] sm:$0xff] %v656
        %669 = vst [vmem:[%s271 + $0x10] sm:$0xff] %v661
        %670 = vst [vmem:[%s271 + $0x18] sm:$0xff] %v664
        %s671 = sand.u32 %s141, 1
        %s672 = scalar_lea.sflag [#allocation5], %s671
        %s673 = sand.u32 %s141, 1
        %s674 = smul.addr %s673, 32
        %s675 = scalar_lea.vmem [#allocation9], %s674
        // Predicated region
        $region53: #{tpu_custom_call.1} parent=39 // pred_check
          %p676 = pneg %p151
        $region54: #{tpu_custom_call.1} parent=39 // pred_check_branch
          %678 = sbr.rel (%p676) target = $region56
        $region55: #{tpu_custom_call.1} parent=39 // pred_region
          %s679 = smul.u32 4, %s23
          %s681 = ssub.s32 512, 512
          %682 = vsyncadd %s672, %s681
          %s683 = smul.addr %s679, 128
          %s684 = scalar_lea.hbm %s5, %s683
          %s685 = sshll.u32 %s675, 4
          %s686 = int_to_ptr.vmem [resolvable:$true] %s685
          %691 = dma.vmem_to_hbm [thread:$0]  %s686, 512, %s684, %s672, 128, 128, 8
        $region56: #{tpu_custom_call.1} parent=39 // pred_fallthru
          _
      $region40: #{tpu_custom_call.1} parent=5 // pred_fallthru
        _
      %p692 = scmp.le.s32.totalorder 2, %s18
      // Predicated region
      $region57: #{tpu_custom_call.1} parent=5 // pred_check
        %p693 = pneg %p692
      $region58: #{tpu_custom_call.1} parent=5 // pred_check_branch
        %695 = sbr.rel (%p693) target = $region60
      $region59: #{tpu_custom_call.1} parent=5 // pred_region
        %s696 = ssub.s32 %s18, 2
        // Predicated region
        $region61: #{tpu_custom_call.1} parent=59 // pred_check
          %p697 = pneg %p157
        $region62: #{tpu_custom_call.1} parent=59 // pred_check_branch
          %699 = sbr.rel (%p697) target = $region64
        $region63: #{tpu_custom_call.1} parent=59 // pred_region
          %s700 = sand.u32 %s142, 1
          %s701 = scalar_lea.sflag [#allocation5], %s700
          %s702 = sand.u32 %s142, 1
          %s703 = smul.addr %s702, 32
          %s704 = scalar_lea.vmem [#allocation9], %s703
          %705 = dma.done %s701, 512
        $region64: #{tpu_custom_call.1} parent=59 // pred_fallthru
          _
      $region60: #{tpu_custom_call.1} parent=5 // pred_fallthru
        _
    $region6: #{tpu_custom_call.1} parent=1 // loop_footer
      %s22 = sadd.s32 1, %s18
    $region7: #{tpu_custom_call.1} parent=1 // loop_footer_branch
      %17 = sbr.rel target = $region3
    $region8: #{tpu_custom_call.1} parent=1 // loop_exit
      _
    %706 = vsyncpa [#allocation4], 1
    %s707 = scalar_lea.sflag [#allocation4], 1
    %708 = vsyncpa %s707, 1
    %709 = vsyncpa [#allocation7], 1
    %710 = vsyncpa [#allocation5], 1
    %s711 = scalar_lea.sflag [#allocation5], 1
    %712 = vsyncpa %s711, 1

// kernel: tpu_custom_call.1
$region0: #{tpu_custom_call.1}
  #allocation0 [shape = 'u32[]', space=smem, size = 0x4, offset = 0x4, fixed_abs, tag = 'smem constant byte address 0x4 - core index']
  #allocation1 [shape = 'u32[144,128]{1,0:T(1,128)}', space=vmem, size = 0x12000, scoped, tag = 'internal scratch']
  #allocation2 [shape = 'bf16[32,128]{1,0:T(16,128)(2,1)}', space=vmem, size = 0x2000, scoped, tag = 'scratch operand']
  %s0 = inlined_call_operand.hbm [shape: f32[64,128], index: 0, kind: input, shape index: {}]
  %s1 = inlined_call_operand.hbm [shape: bf16[2,128,128], index: 1, kind: input, shape index: {}]
  %s2 = inlined_call_operand.vmem [shape: f32[2,1,128], index: 2, kind: input, shape index: {}]
  %s3 = inlined_call_operand.hbm [shape: bf16[128,128], index: 3, kind: input, shape index: {}]
  %s4 = inlined_call_operand.vmem [shape: f32[1,128], index: 4, kind: input, shape index: {}]
  %s5 = inlined_call_operand.hbm [shape: f32[64,128], index: 5, kind: output, shape index: {}]
  %s6 = sld [smem:[#allocation0]]
  $region65: #{tpu_custom_call.1} parent=0
    _
  %s8 = ssub.s32 1, %s6
  %s9 = scalar_select 0, %s8, %s6
  $region1: #{tpu_custom_call.1} parent=0
    #allocation3 [shape = 'u8[32768]{0}', space=vmem, size = 0x8000, scoped, tag = 'input window, operand 0']
    #allocation4 [shape = 's32[2]{0}', space=sflag, size = 0x8, scoped, tag = 'scoped memory for tpu_custom_call.1']
    #allocation5 [shape = 's32[2]{0}', space=sflag, size = 0x8, scoped, tag = 'scoped memory for tpu_custom_call.1']
    #allocation6 [shape = 'u8[65536]{0}', space=vmem, size = 0x10000, scoped, tag = 'input window, operand 1, single buffered']
    #allocation7 [shape = 's32[1]{0}', space=sflag, size = 0x4, scoped, tag = 'scoped memory for tpu_custom_call.1']
    #allocation8 [shape = 'u8[32768]{0}', space=vmem, size = 0x8000, scoped, tag = 'input window, operand 3, single buffered']
    #allocation9 [shape = 'u8[32768]{0}', space=vmem, size = 0x8000, scoped, tag = 'output window, operand 0']
    %10 = vsyncpa [#allocation4], 0
    %s11 = scalar_lea.sflag [#allocation4], 1
    %12 = vsyncpa %s11, 0
    %13 = vsyncpa [#allocation7], 0
    %14 = vsyncpa [#allocation5], 0
    %s15 = scalar_lea.sflag [#allocation5], 1
    %16 = vsyncpa %s15, 0
    loop: start=0, step=1, limit=4
    $region2: #{tpu_custom_call.1} parent=1 // loop_pre_header
      _
    $region3: #{tpu_custom_call.1} parent=1 // loop_header
      %s18 = sphi 0, %s22
      %p19 = scmp.ge.s32.totalorder %s18, 4
      %s28 = sphi 0, %s30
      %s31 = sphi 0, %s28
      %s32 = sphi 0, %s31
      %s48 = sphi 0, %s32
      %s52 = sphi 0, %s52
      %s54 = sphi 0, %s52
      %s55 = sphi 0, %s54
      %s69 = sphi 0, %s55
      %s73 = sphi 0, %s73
      %s75 = sphi 0, %s73
      %s76 = sphi 0, %s75
      %s90 = sphi 0, %s76
      %s94 = sphi 0, %s94
      %s96 = sphi 0, %s94
      %s97 = sphi 0, %s96
      %s111 = sphi 0, %s97
      %s115 = sphi 0, %s115
      %s117 = sphi 0, %s115
      %s118 = sphi 0, %s117
      %s132 = sphi 0, %s118
      %s138 = sphi 0, %s140
      %s141 = sphi 0, %s138
      %s142 = sphi 0, %s141
      %s158 = sphi 0, %s142
    $region4: #{tpu_custom_call.1} parent=1 // loop_header_branch
      %21 = sbr.rel (%p19) target = $region8
    $region5: #{tpu_custom_call.1} parent=1 // loop_body
      %s23 = ssub.s32 %s18, 1
      %s24 = ssub.s32 %s18, 2
      %s25 = sadd.s32 %s18, 1
      %s26 = ssub.s32 %s18, %s25
      %p27 = scmp.eq.s32.totalorder %s26, 0
      %s29 = sadd.s32 %s28, 1
      %s30 = scalar_select %p27, %s28, %s29
      %p33 = pneg %p27
      %p34 = scmp.eq.s32.totalorder %s18, 1
      %p35 = por %p33, %p34
      %p36 = scmp.ne.s32.totalorder %s28, %s31
      %p37 = scmp.eq.s32.totalorder %s18, 0
      %p38 = por %p36, %p37
      %p39 = scmp.ne.s32.totalorder %s28, %s31
      %p40 = scmp.eq.s32.totalorder %s23, 1
      %p41 = por %p39, %p40
      %p42 = scmp.ne.s32.totalorder %s31, %s32
      %p43 = scmp.eq.s32.totalorder %s23, 0
      %p44 = por %p42, %p43
      %p45 = scmp.ne.s32.totalorder %s31, %s32
      %p46 = scmp.eq.s32.totalorder %s24, 1
      %p47 = por %p45, %p46
      %p49 = scmp.ne.s32.totalorder %s32, %s48
      %p50 = scmp.eq.s32.totalorder %s24, 0
      %p51 = por %p49, %p50
      %s53 = sadd.s32 %s52, 1
      %p56 = scmp.eq.s32.totalorder %s18, 1
      %p57 = scmp.ne.s32.totalorder %s52, %s54
      %p58 = scmp.eq.s32.totalorder %s18, 0
      %p59 = por %p57, %p58
      %p60 = scmp.ne.s32.totalorder %s52, %s54
      %p61 = scmp.eq.s32.totalorder %s23, 1
      %p62 = por %p60, %p61
      %p63 = scmp.ne.s32.totalorder %s54, %s55
      %p64 = scmp.eq.s32.totalorder %s23, 0
      %p65 = por %p63, %p64
      %p66 = scmp.ne.s32.totalorder %s54, %s55
      %p67 = scmp.eq.s32.totalorder %s24, 1
      %p68 = por %p66, %p67
      %p70 = scmp.ne.s32.totalorder %s55, %s69
      %p71 = scmp.eq.s32.totalorder %s24, 0
      %p72 = por %p70, %p71
      %s74 = sadd.s32 %s73, 1
      %p77 = scmp.eq.s32.totalorder %s18, 1
      %p78 = scmp.ne.s32.totalorder %s73, %s75
      %p79 = scmp.eq.s32.totalorder %s18, 0
      %p80 = por %p78, %p79
      %p81 = scmp.ne.s32.totalorder %s73, %s75
      %p82 = scmp.eq.s32.totalorder %s23, 1
      %p83 = por %p81, %p82
      %p84 = scmp.ne.s32.totalorder %s75, %s76
      %p85 = scmp.eq.s32.totalorder %s23, 0
      %p86 = por %p84, %p85
      %p87 = scmp.ne.s32.totalorder %s75, %s76
      %p88 = scmp.eq.s32.totalorder %s24, 1
      %p89 = por %p87, %p88
      %p91 = scmp.ne.s32.totalorder %s76, %s90
      %p92 = scmp.eq.s32.totalorder %s24, 0
      %p93 = por %p91, %p92
      %s95 = sadd.s32 %s94, 1
      %p98 = scmp.eq.s32.totalorder %s18, 1
      %p99 = scmp.ne.s32.totalorder %s94, %s96
      %p100 = scmp.eq.s32.totalorder %s18, 0
      %p101 = por %p99, %p100
      %p102 = scmp.ne.s32.totalorder %s94, %s96
      %p103 = scmp.eq.s32.totalorder %s23, 1
      %p104 = por %p102, %p103
      %p105 = scmp.ne.s32.totalorder %s96, %s97
      %p106 = scmp.eq.s32.totalorder %s23, 0
      %p107 = por %p105, %p106
      %p108 = scmp.ne.s32.totalorder %s96, %s97
      %p109 = scmp.eq.s32.totalorder %s24, 1
      %p110 = por %p108, %p109
      %p112 = scmp.ne.s32.totalorder %s97, %s111
      %p113 = scmp.eq.s32.totalorder %s24, 0
      %p114 = por %p112, %p113
      %s116 = sadd.s32 %s115, 1
      %p119 = scmp.eq.s32.totalorder %s18, 1
      %p120 = scmp.ne.s32.totalorder %s115, %s117
      %p121 = scmp.eq.s32.totalorder %s18, 0
      %p122 = por %p120, %p121
      %p123 = scmp.ne.s32.totalorder %s115, %s117
      %p124 = scmp.eq.s32.totalorder %s23, 1
      %p125 = por %p123, %p124
      %p126 = scmp.ne.s32.totalorder %s117, %s118
      %p127 = scmp.eq.s32.totalorder %s23, 0
      %p128 = por %p126, %p127
      %p129 = scmp.ne.s32.totalorder %s117, %s118
      %p130 = scmp.eq.s32.totalorder %s24, 1
      %p131 = por %p129, %p130
      %p133 = scmp.ne.s32.totalorder %s118, %s132
      %p134 = scmp.eq.s32.totalorder %s24, 0
      %p135 = por %p133, %p134
      %s136 = ssub.s32 %s18, %s25
      %p137 = scmp.eq.s32.totalorder %s136, 0
      %s139 = sadd.s32 %s138, 1
      %s140 = scalar_select %p137, %s138, %s139
      %p143 = pneg %p137
      %p144 = scmp.eq.s32.totalorder %s18, 1
      %p145 = por %p143, %p144
      %p146 = scmp.ne.s32.totalorder %s138, %s141
      %p147 = scmp.eq.s32.totalorder %s18, 0
      %p148 = por %p146, %p147
      %p149 = scmp.ne.s32.totalorder %s138, %s141
      %p150 = scmp.eq.s32.totalorder %s23, 1
      %p151 = por %p149, %p150
      %p152 = scmp.ne.s32.totalorder %s141, %s142
      %p153 = scmp.eq.s32.totalorder %s23, 0
      %p154 = por %p152, %p153
      %p155 = scmp.ne.s32.totalorder %s141, %s142
      %p156 = scmp.eq.s32.totalorder %s24, 1
      %p157 = por %p155, %p156
      %p159 = scmp.ne.s32.totalorder %s142, %s158
      %p160 = scmp.eq.s32.totalorder %s24, 0
      %p161 = por %p159, %p160
      %p162 = scmp.le.s32.totalorder 1, %s18
      %p163 = scmp.lt.s32.totalorder %s18, 3
      %p164 = pnand %p162, %p163
      %p165 = pneg %p164
      // Predicated region
      $region9: #{tpu_custom_call.1} parent=5 // pred_check
        _
      $region10: #{tpu_custom_call.1} parent=5 // pred_check_branch
        %167 = sbr.rel (%p164) target = $region12
      $region11: #{tpu_custom_call.1} parent=5 // pred_region
        %s168 = ssub.s32 %s18, 1
        // Predicated region
        $region13: #{tpu_custom_call.1} parent=11 // pred_check
          %p169 = pneg %p65
        $region14: #{tpu_custom_call.1} parent=11 // pred_check_branch
          %171 = sbr.rel (%p169) target = $region16
        $region15: #{tpu_custom_call.1} parent=11 // pred_region
          %s173 = ssub.s32 2048, 2048
          %174 = vsyncadd [#allocation7], %s173
          %s175 = sshll.u32 [#allocation6], 4
          %s176 = int_to_ptr.vmem [resolvable:$true] %s175
          %181 = dma.hbm_to_vmem [thread:$0]  %s1, 2048, %s176, [#allocation7], 64, 64, 4
        $region16: #{tpu_custom_call.1} parent=11 // pred_fallthru
          _
        // Predicated region
        $region17: #{tpu_custom_call.1} parent=11 // pred_check
          %p182 = pneg %p86
        $region18: #{tpu_custom_call.1} parent=11 // pred_check_branch
          %184 = sbr.rel (%p182) target = $region20
        $region19: #{tpu_custom_call.1} parent=11 // pred_region
          _
        $region20: #{tpu_custom_call.1} parent=11 // pred_fallthru
          _
        // Predicated region
        $region21: #{tpu_custom_call.1} parent=11 // pred_check
          %p185 = pneg %p107
        $region22: #{tpu_custom_call.1} parent=11 // pred_check_branch
          %187 = sbr.rel (%p185) target = $region24
        $region23: #{tpu_custom_call.1} parent=11 // pred_region
          %s189 = ssub.s32 1024, 1024
          %190 = vsyncadd [#allocation7], %s189
          %s191 = sshll.u32 [#allocation8], 4
          %s192 = int_to_ptr.vmem [resolvable:$true] %s191
          %197 = dma.hbm_to_vmem [thread:$0]  %s3, 1024, %s192, [#allocation7], 64, 64, 4
        $region24: #{tpu_custom_call.1} parent=11 // pred_fallthru
          _
        // Predicated region
        $region25: #{tpu_custom_call.1} parent=11 // pred_check
          %p198 = pneg %p128
        $region26: #{tpu_custom_call.1} parent=11 // pred_check_branch
          %200 = sbr.rel (%p198) target = $region28
        $region27: #{tpu_custom_call.1} parent=11 // pred_region
          _
        $region28: #{tpu_custom_call.1} parent=11 // pred_fallthru
          _
      $region12: #{tpu_custom_call.1} parent=5 // pred_fallthru
        _
      %p201 = scmp.lt.s32.totalorder %s18, 2
      // Predicated region
      $region29: #{tpu_custom_call.1} parent=5 // pred_check
        %p202 = pneg %p201
      $region30: #{tpu_custom_call.1} parent=5 // pred_check_branch
        %204 = sbr.rel (%p202) target = $region32
      $region31: #{tpu_custom_call.1} parent=5 // pred_region
        // Predicated region
        $region33: #{tpu_custom_call.1} parent=31 // pred_check
          %p205 = pneg %p38
        $region34: #{tpu_custom_call.1} parent=31 // pred_check_branch
          %207 = sbr.rel (%p205) target = $region36
        $region35: #{tpu_custom_call.1} parent=31 // pred_region
          %s208 = sand.u32 %s28, 1
          %s209 = scalar_lea.sflag [#allocation4], %s208
          %s210 = sand.u32 %s28, 1
          %s211 = smul.addr %s210, 32
          %s212 = scalar_lea.vmem [#allocation3], %s211
          %s213 = smul.u32 4, %s18
          %s215 = ssub.s32 512, 512
          %216 = vsyncadd %s209, %s215
          %s217 = smul.addr %s213, 128
          %s218 = scalar_lea.hbm %s0, %s217
          %s219 = sshll.u32 %s212, 4
          %s220 = int_to_ptr.vmem [resolvable:$true] %s219
          %225 = dma.hbm_to_vmem [thread:$0]  %s218, 512, %s220, %s209, 128, 128, 8
        $region36: #{tpu_custom_call.1} parent=31 // pred_fallthru
          _
      $region32: #{tpu_custom_call.1} parent=5 // pred_fallthru
        _
      %p226 = scmp.le.s32.totalorder 1, %s18
      %p227 = scmp.lt.s32.totalorder %s18, 3
      %p228 = pnand %p226, %p227
      %p229 = pneg %p228
      // Predicated region
      $region37: #{tpu_custom_call.1} parent=5 // pred_check
        _
      $region38: #{tpu_custom_call.1} parent=5 // pred_check_branch
        %231 = sbr.rel (%p228) target = $region40
      $region39: #{tpu_custom_call.1} parent=5 // pred_region
        %s232 = ssub.s32 %s18, 1
        %s233 = sand.u32 %s31, 1
        %s234 = scalar_lea.sflag [#allocation4], %s233
        %s235 = sand.u32 %s31, 1
        %s236 = smul.addr %s235, 32
        %s237 = scalar_lea.vmem [#allocation3], %s236
        // Predicated region
        $region41: #{tpu_custom_call.1} parent=39 // pred_check
          %p238 = pneg %p44
        $region42: #{tpu_custom_call.1} parent=39 // pred_check_branch
          %240 = sbr.rel (%p238) target = $region44
        $region43: #{tpu_custom_call.1} parent=39 // pred_region
          %241 = dma.done %s234, 512
        $region44: #{tpu_custom_call.1} parent=39 // pred_fallthru
          _
        // Predicated region
        $region45: #{tpu_custom_call.1} parent=39 // pred_check
          %p242 = pneg %p65
        $region46: #{tpu_custom_call.1} parent=39 // pred_check_branch
          %244 = sbr.rel (%p242) target = $region48
        $region47: #{tpu_custom_call.1} parent=39 // pred_region
          %245 = dma.done [#allocation7], 2048
        $region48: #{tpu_custom_call.1} parent=39 // pred_fallthru
          _
        // Predicated region
        $region49: #{tpu_custom_call.1} parent=39 // pred_check
          %p246 = pneg %p107
        $region50: #{tpu_custom_call.1} parent=39 // pred_check_branch
          %248 = sbr.rel (%p246) target = $region52
        $region51: #{tpu_custom_call.1} parent=39 // pred_region
          %249 = dma.done [#allocation7], 1024
        $region52: #{tpu_custom_call.1} parent=39 // pred_fallthru
          _
        %s250 = sand.u32 %s31, 1
        %s251 = scalar_lea.sflag [#allocation4], %s250
        %s252 = sand.u32 %s31, 1
        %s253 = smul.addr %s252, 32
        %s254 = scalar_lea.vmem [#allocation3], %s253
        %p255 = pneg %p44
        %p256 = pneg %p41
        %p257 = pneg %p65
        %p258 = pneg %p62
        %p259 = pneg %p86
        %p260 = pneg %p83
        %p261 = pneg %p107
        %p262 = pneg %p104
        %p263 = pneg %p128
        %p264 = pneg %p125
        %p265 = pneg %p154
        %p266 = pneg %p151
        %s267 = sand.u32 %s141, 1
        %s268 = scalar_lea.sflag [#allocation5], %s267
        %s269 = sand.u32 %s141, 1
        %s270 = smul.addr %s269, 32
        %s271 = scalar_lea.vmem [#allocation9], %s270
        %s272 = smul.u32 4, %s23
        %s273 = smul.u32 4, %s23
        %v275 = vld [vmem:[%s237] sm:$0xff]
        %v276 = vld [vmem:[%s237 + $0x8] sm:$0xff]
        %v277 = vld [vmem:[%s237 + $0x10] sm:$0xff]
        %v278 = vld [vmem:[%s237 + $0x18] sm:$0xff]
        %v279 = vpack.c.bf16 %v276, %v275
        %v280 = vpack.c.bf16 %v278, %v277
        %281 = vst [vmem:[#allocation2] sm:$0xff] %v279
        %282 = vst [vmem:[#allocation2 + $0x8] sm:$0xff] %v280
        %v283 = vld [vmem:[#allocation2] sm:$0xff]
        %v284 = vld [vmem:[#allocation2 + $0x8] sm:$0xff]
        %v285 = vld [vmem:[#allocation6] sm:$0xf]
        %v286 = vld [vmem:[#allocation6 + $0x4] sm:$0xf]
        %v287 = vld [vmem:[#allocation6 + $0x8] sm:$0xf]
        %v288 = vld [vmem:[#allocation6 + $0xc] sm:$0xf]
        %v289 = vld [vmem:[#allocation6 + $0x10] sm:$0xf]
        %v290 = vld [vmem:[#allocation6 + $0x14] sm:$0xf]
        %v291 = vld [vmem:[#allocation6 + $0x18] sm:$0xf]
        %v292 = vld [vmem:[#allocation6 + $0x1c] sm:$0xf]
        %v293 = vld [vmem:[#allocation6 + $0x20] sm:$0xf]
        %v294 = vld [vmem:[#allocation6 + $0x24] sm:$0xf]
        %v295 = vld [vmem:[#allocation6 + $0x28] sm:$0xf]
        %v296 = vld [vmem:[#allocation6 + $0x2c] sm:$0xf]
        %v297 = vld [vmem:[#allocation6 + $0x30] sm:$0xf]
        %v298 = vld [vmem:[#allocation6 + $0x34] sm:$0xf]
        %v299 = vld [vmem:[#allocation6 + $0x38] sm:$0xf]
        %v300 = vld [vmem:[#allocation6 + $0x3c] sm:$0xf]
        %v301 = vld [vmem:[%s2] sm:$0x1]
        %v303 = vlaneseq
        %v304 = vshrl.u32 %v303, 7
        %v305 = vsub.s32 0, %v304
        %v306 = vrot.slane %v301, %v305
        %v324 = vunpack.c.l.b16 %v285
        %v325 = vunpack.c.l.b16 %v286
        %v326 = vunpack.c.l.b16 %v287
        %v327 = vunpack.c.l.b16 %v288
        %v328 = vunpack.c.l.b16 %v289
        %v329 = vunpack.c.l.b16 %v290
        %v330 = vunpack.c.l.b16 %v291
        %v331 = vunpack.c.l.b16 %v292
        %v332 = vunpack.c.l.b16 %v293
        %v333 = vunpack.c.l.b16 %v294
        %v334 = vunpack.c.l.b16 %v295
        %v335 = vunpack.c.l.b16 %v296
        %v336 = vunpack.c.l.b16 %v297
        %v337 = vunpack.c.l.b16 %v298
        %v338 = vunpack.c.l.b16 %v299
        %v339 = vunpack.c.l.b16 %v300
        %v340 = vpack.c.b16 %v325, %v324
        %v341 = vpack.c.b16 %v327, %v326
        %v342 = vpack.c.b16 %v329, %v328
        %v343 = vpack.c.b16 %v331, %v330
        %v344 = vpack.c.b16 %v333, %v332
        %v345 = vpack.c.b16 %v335, %v334
        %v346 = vpack.c.b16 %v337, %v336
        %v347 = vpack.c.b16 %v339, %v338
        %356 = vmatprep.subr.bf16.mxu0 0
        %357 = vmatpush1.bf16.msra.mxu0 %v340
        %358 = vmatprep.subr.bf16.mxu0 0
        %359 = vmatpush1.bf16.msra.mxu0 %v341
        %360 = vmatprep.subr.bf16.mxu0 0
        %361 = vmatpush1.bf16.msra.mxu0 %v342
        %362 = vmatprep.subr.bf16.mxu0 0
        %363 = vmatpush1.bf16.msra.mxu0 %v343
        %364 = vmatprep.subr.bf16.mxu0 0
        %365 = vmatpush1.bf16.msra.mxu0 %v344
        %366 = vmatprep.subr.bf16.mxu0 0
        %367 = vmatpush1.bf16.msra.mxu0 %v345
        %368 = vmatprep.subr.bf16.mxu0 0
        %369 = vmatpush1.bf16.msra.mxu0 %v346
        %370 = vmatprep.subr.bf16.mxu0 0
        %371 = vmatpush1.bf16.msra.mxu0 %v347
        %372 = vmatprep.subr.bf16.mxu0 0
        %373 = vmatpush1.bf16.msra.mxu0 0
        %374 = vmatprep.subr.bf16.mxu0 0
        %375 = vmatpush1.bf16.msra.mxu0 0
        %376 = vmatprep.subr.bf16.mxu0 0
        %377 = vmatpush1.bf16.msra.mxu0 0
        %378 = vmatprep.subr.bf16.mxu0 0
        %379 = vmatpush1.bf16.msra.mxu0 0
        %380 = vmatprep.subr.bf16.mxu0 0
        %381 = vmatpush1.bf16.msra.mxu0 0
        %382 = vmatprep.subr.bf16.mxu0 0
        %383 = vmatpush1.bf16.msra.mxu0 0
        %384 = vmatprep.subr.bf16.mxu0 0
        %385 = vmatpush1.bf16.msra.mxu0 0
        %386 = vmatprep.subr.bf16.mxu0 0
        %387 = vmatpush1.bf16.msra.mxu0 0
        %388 = vmatprep.mubr.bf16.mxu0 0
        %389 = vmatmul.mubr.bf16.gmra.mrb[0].mxu0 %v283
        %v390 = vpop.f32.mrb[0].mxu0
        %v391 = vadd.f32 %v306, %v390
        %v392 = vpop.f32.mrb[0].mxu0
        %v393 = vpop.f32.mrb[0].mxu0
        %v394 = vadd.f32 %v306, %v393
        %v395 = vpop.f32.mrb[0].mxu0
        %396 = vmatprep.mubr.bf16.mxu0 0
        %397 = vmatmul.mubr.bf16.gmra.mrb[0].mxu0 %v284
        %v398 = vpop.f32.mrb[0].mxu0
        %v399 = vadd.f32 %v306, %v398
        %v400 = vpop.f32.mrb[0].mxu0
        %v401 = vpop.f32.mrb[0].mxu0
        %v402 = vadd.f32 %v306, %v401
        %v403 = vpop.f32.mrb[0].mxu0
        %404 = vdwg.mxu0
        %v405 = vmax.f32 %v391, 0.0
        %v406 = vmax.f32 %v394, 0.0
        %v407 = vmax.f32 %v399, 0.0
        %v408 = vmax.f32 %v402, 0.0
        %v409 = vpack.c.bf16 %v406, %v405
        %v410 = vpack.c.bf16 %v408, %v407
        %411 = vst [vmem:[#allocation2] sm:$0xff] %v409
        %412 = vst [vmem:[#allocation2 + $0x8] sm:$0xff] %v410
        %v413 = vld [vmem:[#allocation2] sm:$0xff]
        %v414 = vld [vmem:[#allocation2 + $0x8] sm:$0xff]
        %s415 = scalar_lea.vmem [#allocation6], 64
        %v416 = vld [vmem:[%s415] sm:$0xf]
        %v417 = vld [vmem:[%s415 + $0x4] sm:$0xf]
        %v418 = vld [vmem:[%s415 + $0x8] sm:$0xf]
        %v419 = vld [vmem:[%s415 + $0xc] sm:$0xf]
        %v420 = vld [vmem:[%s415 + $0x10] sm:$0xf]
        %v421 = vld [vmem:[%s415 + $0x14] sm:$0xf]
        %v422 = vld [vmem:[%s415 + $0x18] sm:$0xf]
        %v423 = vld [vmem:[%s415 + $0x1c] sm:$0xf]
        %v424 = vld [vmem:[%s415 + $0x20] sm:$0xf]
        %v425 = vld [vmem:[%s415 + $0x24] sm:$0xf]
        %v426 = vld [vmem:[%s415 + $0x28] sm:$0xf]
        %v427 = vld [vmem:[%s415 + $0x2c] sm:$0xf]
        %v428 = vld [vmem:[%s415 + $0x30] sm:$0xf]
        %v429 = vld [vmem:[%s415 + $0x34] sm:$0xf]
        %v430 = vld [vmem:[%s415 + $0x38] sm:$0xf]
        %v431 = vld [vmem:[%s415 + $0x3c] sm:$0xf]
        %s432 = scalar_lea.vmem %s2, 1
        %v433 = vld [vmem:[%s432] sm:$0x1]
        %v435 = vlaneseq
        %v436 = vshrl.u32 %v435, 7
        %v437 = vsub.s32 0, %v436
        %v438 = vrot.slane %v433, %v437
        %v456 = vunpack.c.l.b16 %v416
        %v457 = vunpack.c.l.b16 %v417
        %v458 = vunpack.c.l.b16 %v418
        %v459 = vunpack.c.l.b16 %v419
        %v460 = vunpack.c.l.b16 %v420
        %v461 = vunpack.c.l.b16 %v421
        %v462 = vunpack.c.l.b16 %v422
        %v463 = vunpack.c.l.b16 %v423
        %v464 = vunpack.c.l.b16 %v424
        %v465 = vunpack.c.l.b16 %v425
        %v466 = vunpack.c.l.b16 %v426
        %v467 = vunpack.c.l.b16 %v427
        %v468 = vunpack.c.l.b16 %v428
        %v469 = vunpack.c.l.b16 %v429
        %v470 = vunpack.c.l.b16 %v430
        %v471 = vunpack.c.l.b16 %v431
        %v472 = vpack.c.b16 %v457, %v456
        %v473 = vpack.c.b16 %v459, %v458
        %v474 = vpack.c.b16 %v461, %v460
        %v475 = vpack.c.b16 %v463, %v462
        %v476 = vpack.c.b16 %v465, %v464
        %v477 = vpack.c.b16 %v467, %v466
        %v478 = vpack.c.b16 %v469, %v468
        %v479 = vpack.c.b16 %v471, %v470
        %488 = vmatprep.subr.bf16.mxu0 0
        %489 = vmatpush1.bf16.msra.mxu0 %v472
        %490 = vmatprep.subr.bf16.mxu0 0
        %491 = vmatpush1.bf16.msra.mxu0 %v473
        %492 = vmatprep.subr.bf16.mxu0 0
        %493 = vmatpush1.bf16.msra.mxu0 %v474
        %494 = vmatprep.subr.bf16.mxu0 0
        %495 = vmatpush1.bf16.msra.mxu0 %v475
        %496 = vmatprep.subr.bf16.mxu0 0
        %497 = vmatpush1.bf16.msra.mxu0 %v476
        %498 = vmatprep.subr.bf16.mxu0 0
        %499 = vmatpush1.bf16.msra.mxu0 %v477
        %500 = vmatprep.subr.bf16.mxu0 0
        %501 = vmatpush1.bf16.msra.mxu0 %v478
        %502 = vmatprep.subr.bf16.mxu0 0
        %503 = vmatpush1.bf16.msra.mxu0 %v479
        %504 = vmatprep.subr.bf16.mxu0 0
        %505 = vmatpush1.bf16.msra.mxu0 0
        %506 = vmatprep.subr.bf16.mxu0 0
        %507 = vmatpush1.bf16.msra.mxu0 0
        %508 = vmatprep.subr.bf16.mxu0 0
        %509 = vmatpush1.bf16.msra.mxu0 0
        %510 = vmatprep.subr.bf16.mxu0 0
        %511 = vmatpush1.bf16.msra.mxu0 0
        %512 = vmatprep.subr.bf16.mxu0 0
        %513 = vmatpush1.bf16.msra.mxu0 0
        %514 = vmatprep.subr.bf16.mxu0 0
        %515 = vmatpush1.bf16.msra.mxu0 0
        %516 = vmatprep.subr.bf16.mxu0 0
        %517 = vmatpush1.bf16.msra.mxu0 0
        %518 = vmatprep.subr.bf16.mxu0 0
        %519 = vmatpush1.bf16.msra.mxu0 0
        %520 = vmatprep.mubr.bf16.mxu0 0
        %521 = vmatmul.mubr.bf16.gmra.mrb[0].mxu0 %v413
        %v522 = vpop.f32.mrb[0].mxu0
        %v523 = vadd.f32 %v438, %v522
        %v524 = vpop.f32.mrb[0].mxu0
        %v525 = vpop.f32.mrb[0].mxu0
        %v526 = vadd.f32 %v438, %v525
        %v527 = vpop.f32.mrb[0].mxu0
        %528 = vmatprep.mubr.bf16.mxu0 0
        %529 = vmatmul.mubr.bf16.gmra.mrb[0].mxu0 %v414
        %v530 = vpop.f32.mrb[0].mxu0
        %v531 = vadd.f32 %v438, %v530
        %v532 = vpop.f32.mrb[0].mxu0
        %v533 = vpop.f32.mrb[0].mxu0
        %v534 = vadd.f32 %v438, %v533
        %v535 = vpop.f32.mrb[0].mxu0
        %536 = vdwg.mxu0
        %v537 = vmax.f32 %v523, 0.0
        %v538 = vmax.f32 %v526, 0.0
        %v539 = vmax.f32 %v531, 0.0
        %v540 = vmax.f32 %v534, 0.0
        %v541 = vpack.c.bf16 %v538, %v537
        %v542 = vpack.c.bf16 %v540, %v539
        %543 = vst [vmem:[#allocation2] sm:$0xff] %v541
        %544 = vst [vmem:[#allocation2 + $0x8] sm:$0xff] %v542
        %v545 = vld [vmem:[#allocation2] sm:$0xff]
        %v546 = vld [vmem:[#allocation2 + $0x8] sm:$0xff]
        %v547 = vld [vmem:[#allocation8] sm:$0xf]
        %v548 = vld [vmem:[#allocation8 + $0x4] sm:$0xf]
        %v549 = vld [vmem:[#allocation8 + $0x8] sm:$0xf]
        %v550 = vld [vmem:[#allocation8 + $0xc] sm:$0xf]
        %v551 = vld [vmem:[#allocation8 + $0x10] sm:$0xf]
        %v552 = vld [vmem:[#allocation8 + $0x14] sm:$0xf]
        %v553 = vld [vmem:[#allocation8 + $0x18] sm:$0xf]
        %v554 = vld [vmem:[#allocation8 + $0x1c] sm:$0xf]
        %v555 = vld [vmem:[#allocation8 + $0x20] sm:$0xf]
        %v556 = vld [vmem:[#allocation8 + $0x24] sm:$0xf]
        %v557 = vld [vmem:[#allocation8 + $0x28] sm:$0xf]
        %v558 = vld [vmem:[#allocation8 + $0x2c] sm:$0xf]
        %v559 = vld [vmem:[#allocation8 + $0x30] sm:$0xf]
        %v560 = vld [vmem:[#allocation8 + $0x34] sm:$0xf]
        %v561 = vld [vmem:[#allocation8 + $0x38] sm:$0xf]
        %v562 = vld [vmem:[#allocation8 + $0x3c] sm:$0xf]
        %v563 = vld [vmem:[%s4] sm:$0x1]
        %v565 = vlaneseq
        %v566 = vshrl.u32 %v565, 7
        %v567 = vsub.s32 0, %v566
        %v568 = vrot.slane %v563, %v567
        %v586 = vunpack.c.l.b16 %v547
        %v587 = vunpack.c.l.b16 %v548
        %v588 = vunpack.c.l.b16 %v549
        %v589 = vunpack.c.l.b16 %v550
        %v590 = vunpack.c.l.b16 %v551
        %v591 = vunpack.c.l.b16 %v552
        %v592 = vunpack.c.l.b16 %v553
        %v593 = vunpack.c.l.b16 %v554
        %v594 = vunpack.c.l.b16 %v555
        %v595 = vunpack.c.l.b16 %v556
        %v596 = vunpack.c.l.b16 %v557
        %v597 = vunpack.c.l.b16 %v558
        %v598 = vunpack.c.l.b16 %v559
        %v599 = vunpack.c.l.b16 %v560
        %v600 = vunpack.c.l.b16 %v561
        %v601 = vunpack.c.l.b16 %v562
        %v602 = vpack.c.b16 %v587, %v586
        %v603 = vpack.c.b16 %v589, %v588
        %v604 = vpack.c.b16 %v591, %v590
        %v605 = vpack.c.b16 %v593, %v592
        %v606 = vpack.c.b16 %v595, %v594
        %v607 = vpack.c.b16 %v597, %v596
        %v608 = vpack.c.b16 %v599, %v598
        %v609 = vpack.c.b16 %v601, %v600
        %618 = vmatprep.subr.bf16.mxu0 0
        %619 = vmatpush1.bf16.msra.mxu0 %v602
        %620 = vmatprep.subr.bf16.mxu0 0
        %621 = vmatpush1.bf16.msra.mxu0 %v603
        %622 = vmatprep.subr.bf16.mxu0 0
        %623 = vmatpush1.bf16.msra.mxu0 %v604
        %624 = vmatprep.subr.bf16.mxu0 0
        %625 = vmatpush1.bf16.msra.mxu0 %v605
        %626 = vmatprep.subr.bf16.mxu0 0
        %627 = vmatpush1.bf16.msra.mxu0 %v606
        %628 = vmatprep.subr.bf16.mxu0 0
        %629 = vmatpush1.bf16.msra.mxu0 %v607
        %630 = vmatprep.subr.bf16.mxu0 0
        %631 = vmatpush1.bf16.msra.mxu0 %v608
        %632 = vmatprep.subr.bf16.mxu0 0
        %633 = vmatpush1.bf16.msra.mxu0 %v609
        %634 = vmatprep.subr.bf16.mxu0 0
        %635 = vmatpush1.bf16.msra.mxu0 0
        %636 = vmatprep.subr.bf16.mxu0 0
        %637 = vmatpush1.bf16.msra.mxu0 0
        %638 = vmatprep.subr.bf16.mxu0 0
        %639 = vmatpush1.bf16.msra.mxu0 0
        %640 = vmatprep.subr.bf16.mxu0 0
        %641 = vmatpush1.bf16.msra.mxu0 0
        %642 = vmatprep.subr.bf16.mxu0 0
        %643 = vmatpush1.bf16.msra.mxu0 0
        %644 = vmatprep.subr.bf16.mxu0 0
        %645 = vmatpush1.bf16.msra.mxu0 0
        %646 = vmatprep.subr.bf16.mxu0 0
        %647 = vmatpush1.bf16.msra.mxu0 0
        %648 = vmatprep.subr.bf16.mxu0 0
        %649 = vmatpush1.bf16.msra.mxu0 0
        %650 = vmatprep.mubr.bf16.mxu0 0
        %651 = vmatmul.mubr.bf16.gmra.mrb[0].mxu0 %v545
        %v652 = vpop.f32.mrb[0].mxu0
        %v653 = vadd.f32 %v568, %v652
        %v654 = vpop.f32.mrb[0].mxu0
        %v655 = vpop.f32.mrb[0].mxu0
        %v656 = vadd.f32 %v568, %v655
        %v657 = vpop.f32.mrb[0].mxu0
        %658 = vmatprep.mubr.bf16.mxu0 0
        %659 = vmatmul.mubr.bf16.gmra.mrb[0].mxu0 %v546
        %v660 = vpop.f32.mrb[0].mxu0
        %v661 = vadd.f32 %v568, %v660
        %v662 = vpop.f32.mrb[0].mxu0
        %v663 = vpop.f32.mrb[0].mxu0
        %v664 = vadd.f32 %v568, %v663
        %v665 = vpop.f32.mrb[0].mxu0
        %666 = vdwg.mxu0
        %667 = vst [vmem:[%s271] sm:$0xff] %v653
        %668 = vst [vmem:[%s271 + $0x8] sm:$0xff] %v656
        %669 = vst [vmem:[%s271 + $0x10] sm:$0xff] %v661
        %670 = vst [vmem:[%s271 + $0x18] sm:$0xff] %v664
        %s671 = sand.u32 %s141, 1
        %s672 = scalar_lea.sflag [#allocation5], %s671
        %s673 = sand.u32 %s141, 1
        %s674 = smul.addr %s673, 32
        %s675 = scalar_lea.vmem [#allocation9], %s674
        // Predicated region
        $region53: #{tpu_custom_call.1} parent=39 // pred_check
          %p676 = pneg %p151
        $region54: #{tpu_custom_call.1} parent=39 // pred_check_branch
          %678 = sbr.rel (%p676) target = $region56
        $region55: #{tpu_custom_call.1} parent=39 // pred_region
          %s679 = smul.u32 4, %s23
          %s681 = ssub.s32 512, 512
          %682 = vsyncadd %s672, %s681
          %s683 = smul.addr %s679, 128
          %s684 = scalar_lea.hbm %s5, %s683
          %s685 = sshll.u32 %s675, 4
          %s686 = int_to_ptr.vmem [resolvable:$true] %s685
          %691 = dma.vmem_to_hbm [thread:$0]  %s686, 512, %s684, %s672, 128, 128, 8
        $region56: #{tpu_custom_call.1} parent=39 // pred_fallthru
          _
      $region40: #{tpu_custom_call.1} parent=5 // pred_fallthru
        _
      %p692 = scmp.le.s32.totalorder 2, %s18
      // Predicated region
      $region57: #{tpu_custom_call.1} parent=5 // pred_check
        %p693 = pneg %p692
      $region58: #{tpu_custom_call.1} parent=5 // pred_check_branch
        %695 = sbr.rel (%p693) target = $region60
      $region59: #{tpu_custom_call.1} parent=5 // pred_region
        %s696 = ssub.s32 %s18, 2
        // Predicated region
        $region61: #{tpu_custom_call.1} parent=59 // pred_check
          %p697 = pneg %p157
        $region62: #{tpu_custom_call.1} parent=59 // pred_check_branch
          %699 = sbr.rel (%p697) target = $region64
        $region63: #{tpu_custom_call.1} parent=59 // pred_region
          %s700 = sand.u32 %s142, 1
          %s701 = scalar_lea.sflag [#allocation5], %s700
          %s702 = sand.u32 %s142, 1
          %s703 = smul.addr %s702, 32
          %s704 = scalar_lea.vmem [#allocation9], %s703
          %705 = dma.done %s701, 512
        $region64: #{tpu_custom_call.1} parent=59 // pred_fallthru
          _
      $region60: #{tpu_custom_call.1} parent=5 // pred_fallthru
        _
    $region6: #{tpu_custom_call.1} parent=1 // loop_footer
      %s22 = sadd.s32 1, %s18
    $region7: #{tpu_custom_call.1} parent=1 // loop_footer_branch
      %17 = sbr.rel target = $region3
    $region8: #{tpu_custom_call.1} parent=1 // loop_exit
      _
    %706 = vsyncpa [#allocation4], 1
    %s707 = scalar_lea.sflag [#allocation4], 1
    %708 = vsyncpa %s707, 1
    %709 = vsyncpa [#allocation7], 1
    %710 = vsyncpa [#allocation5], 1
    %s711 = scalar_lea.sflag [#allocation5], 1
    %712 = vsyncpa %s711, 1

</llo_original>
